<compile_context>
chip_gen: v6e
topology: v6e:2x2x1
jax: 0.10.0
libtpu: 0.0.40
codegen_flags: <defaults>
</compile_context>

<pallas_src>
from functools import partial

import jax
import jax.numpy as jnp
import numpy as np
from jax.experimental import pallas as pl
from jax.experimental.pallas import tpu as pltpu

L2_WEIGHT = 0.001  # trainer: loss = loss_ce + 0.001 * l2_loss
_MIB = 1024 * 1024


# --------------------------------------------------------------------------------------
# Kernel
# --------------------------------------------------------------------------------------
def _trainer_kernel(emb_ref, lbl_ref, w1_ref, b1_ref, w2_ref,
                    nll_ref, hsq_ref,
                    h_sc, m_sc, l_sc, lab_sc, hsq_sc,
                    *, vocab_tile):
    """Grid = (row_tiles, vocab_tiles); vocab is the inner reduction axis.

    emb_ref : (TN, D)  bf16   embedded tokens for this row tile
    lbl_ref : (TN, 1)  int32  labels for this row tile
    w1_ref  : (D, D)   bf16   hidden weight   (resident, single-buffered)
    b1_ref  : (1, D)   f32    hidden bias     (resident, single-buffered)
    w2_ref  : (D, TV)  bf16   vocab-projection slab for this vocab tile (streamed)
    nll_ref : (TN, 1)  f32    per-row -log p(label)       (written at last vocab tile)
    hsq_ref : (TN, 1)  f32    per-row sum over D of h*h   (written at last vocab tile)
    """
    j = pl.program_id(1)
    nv = pl.num_programs(1)

    # --- once per row tile: hidden layer + online-softmax state init ------------------
    @pl.when(j == 0)
    def _():
        h = jnp.dot(emb_ref[...], w1_ref[...],
                    preferred_element_type=jnp.float32) + b1_ref[...]   # (TN, D) f32
        h = jax.nn.gelu(h)                                              # f32 elementwise
        hsq_sc[...] = jnp.sum(h * h, axis=-1, keepdims=True)
        h_sc[...] = h.astype(h_sc.dtype)                                # bf16 for MXU
        m_sc[...] = jnp.full_like(m_sc, -jnp.inf)
        l_sc[...] = jnp.zeros_like(l_sc)
        lab_sc[...] = jnp.zeros_like(lab_sc)

    # --- per vocab tile: logits chunk + streaming logsumexp ---------------------------
    logits = jnp.dot(h_sc[...], w2_ref[...],
                     preferred_element_type=jnp.float32)                # (TN, TV) f32

    # Label logit: shift the (TN, 1) labels by the tile offset instead of adding the
    # offset across the full (TN, TV) iota plane every tile.
    lbl_shift = lbl_ref[...] - j * vocab_tile                           # (TN, 1) int32
    col = jax.lax.broadcasted_iota(jnp.int32, logits.shape, 1)          # base 0..TV-1
    lab_sc[...] += jnp.sum(jnp.where(col == lbl_shift, logits, 0.0),
                           axis=-1, keepdims=True)

    m_prev = m_sc[...]
    m_new = jnp.maximum(m_prev, jnp.max(logits, axis=-1, keepdims=True))
    l_sc[...] = (l_sc[...] * jnp.exp(m_prev - m_new)
                 + jnp.sum(jnp.exp(logits - m_new), axis=-1, keepdims=True))
    m_sc[...] = m_new

    # --- finalize this row tile --------------------------------------------------------
    @pl.when(j == nv - 1)
    def _():
        nll_ref[...] = (m_sc[...] + jnp.log(l_sc[...])) - lab_sc[...]
        hsq_ref[...] = hsq_sc[...]


# --------------------------------------------------------------------------------------
# Tile / VMEM sizing helpers (generation-aware)
# --------------------------------------------------------------------------------------
def _vmem_capacity_bytes():
    try:
        return int(pltpu.get_tpu_info().vmem_capacity_bytes)
    except Exception:
        return 64 * _MIB  # conservative fallback (v7x per-TC VMEM)


def _largest_divisor_tile(dim, target, granule):
    """Largest multiple of `granule` that divides `dim` and is <= target."""
    if dim <= granule:
        return dim
    target = max(granule, min(target, dim))
    t = (target // granule) * granule
    while t >= granule:
        if dim % t == 0:
            return t
        t -= granule
    for t in range(min(target, dim), 0, -1):   # no granule-aligned divisor
        if dim % t == 0:
            return t
    return dim


def _vmem_footprint_bytes(tn, tv, D):
    """Approximate VMEM footprint for one grid step (buffers + scratch + intermediates)."""
    return (2 * tn * D * 2          # emb tile (bf16), double-buffered
            + 2 * tn * 4            # labels (int32), double-buffered
            + D * D * 2 + D * 4     # w1 (bf16) / b1 (f32), single-buffered residents
            + 2 * D * tv * 2        # w2 slab (bf16), double-buffered stream
            + 2 * 2 * tn * 4        # two (tn,1) f32 outputs, double-buffered
            + tn * D * 2            # h scratch (bf16)
            + 4 * tn * 4            # four (tn,1) f32 scratches
            + 3 * tn * tv * 4)      # logits / exp / masked-select intermediates (f32)


def _pick_tiles(N, D, V, vmem_cap, row_tile, vocab_tile):
    big_vmem = vmem_cap >= 96 * _MIB            # v5e/v6e (128 MiB) vs v7x (64 MiB)
    budget = max(16 * _MIB, vmem_cap - 8 * _MIB)
    tn_target = 512 if big_vmem else 256
    tv_target = 2048 if big_vmem else 512
    if N >= 32:
        tn_target = min(tn_target, N // 2)      # keep >= 2 row tiles for megacore

    tn = row_tile if row_tile is not None else _largest_divisor_tile(N, tn_target, 16)
    tv = vocab_tile if vocab_tile is not None else _largest_divisor_tile(V, tv_target, 128)

    if vocab_tile is None:
        while _vmem_footprint_bytes(tn, tv, D) > budget and tv > 128:
            tv = _largest_divisor_tile(V, tv // 2, 128)
    if row_tile is None:
        while _vmem_footprint_bytes(tn, tv, D) > budget and tn > 16:
            tn = _largest_divisor_tile(N, tn // 2, 16)

    if tn % 8 != 0 and tn != N:                 # sublane safety for awkward N
        tn = N
    assert N % tn == 0 and V % tv == 0
    assert _vmem_footprint_bytes(tn, tv, D) <= vmem_cap, (
        "tile footprint exceeds physical VMEM; pass smaller row_tile/vocab_tile")
    return tn, tv


def _resident_spec(block_shape, index_map):
    """Single-buffered BlockSpec for grid-resident inputs (constant index_map):
    double-buffering them is pure VMEM waste.  Falls back to a plain BlockSpec if this
    jax version does not support BlockSpec(pipeline_mode=...)."""
    try:
        return pl.BlockSpec(block_shape, index_map, pipeline_mode=pl.Buffered(1))
    except (TypeError, AttributeError):
        return pl.BlockSpec(block_shape, index_map)


# --------------------------------------------------------------------------------------
# Wrapper (one training-step forward)
# --------------------------------------------------------------------------------------
def mesh_transformer_trainer_forward(tokens, labels, emb_table, w1, b1, w2,
                                     *, row_tile=None, vocab_tile=None):
    """One training-step forward: returns (loss_ce, l2_loss, total_loss)."""
    B, S = tokens.shape
    N = B * S
    D = emb_table.shape[1]
    V = w2.shape[1]
    assert D % 128 == 0 and V % 128 == 0, "size hidden/vocab to 128-lane multiples"

    vmem_cap = _vmem_capacity_bytes()
    tn, tv = _pick_tiles(N, D, V, vmem_cap, row_tile, vocab_tile)

    # Glue: gather-then-cast (no full-table f32->bf16 pass over the embedding table).
    # Weights are expected to already live in bf16 across training steps (cast once,
    # outside the per-step jit); the cast below is only a fallback.
    emb = emb_table[tokens.reshape(N)].astype(jnp.bfloat16)             # (N, D) bf16
    labels2d = labels.reshape(N, 1).astype(jnp.int32)                   # (N, 1)
    w1_b = w1 if w1.dtype == jnp.bfloat16 else w1.astype(jnp.bfloat16)
    w2_b = w2 if w2.dtype == jnp.bfloat16 else w2.astype(jnp.bfloat16)
    b1_f = b1.astype(jnp.float32).reshape(1, D)

    grid = (N // tn, V // tv)
    row_tiles = grid[0]

    est = _vmem_footprint_bytes(tn, tv, D)
    vmem_limit = int(min(vmem_cap - 4 * _MIB, max(32 * _MIB, 2 * est)))
    vmem_limit = max(vmem_limit, 16 * _MIB)

    cost = pl.CostEstimate(
        flops=2 * N * D * D + 2 * N * D * V,
        transcendentals=N * V + N * D,          # exp per logit + gelu per hidden unit
        bytes_accessed=(N * D * 2               # emb rows (once per row tile)
                        + N * 4                 # labels
                        + D * D * 2 + D * 4     # w1 / b1 (resident, read once)
                        + row_tiles * D * V * 2  # W2 re-streamed once per row tile
                        + 2 * N * 4),           # nll / hsq outputs
    )

    nll, hsq = pl.pallas_call(
        partial(_trainer_kernel, vocab_tile=tv),
        out_shape=(
            jax.ShapeDtypeStruct((N, 1), jnp.float32),   # per-row nll
            jax.ShapeDtypeStruct((N, 1), jnp.float32),   # per-row sum_d h^2
        ),
        grid_spec=pltpu.PrefetchScalarGridSpec(
            num_scalar_prefetch=0,
            grid=grid,
            in_specs=[
                pl.BlockSpec((tn, D), lambda i, j: (i, 0)),     # emb rows
                pl.BlockSpec((tn, 1), lambda i, j: (i, 0)),     # labels
                _resident_spec((D, D), lambda i, j: (0, 0)),    # w1 (single-buffered)
                _resident_spec((1, D), lambda i, j: (0, 0)),    # b1 (single-buffered)
                pl.BlockSpec((D, tv), lambda i, j: (0, j)),     # w2 vocab slab (stream)
            ],
            out_specs=(
                pl.BlockSpec((tn, 1), lambda i, j: (i, 0)),
                pl.BlockSpec((tn, 1), lambda i, j: (i, 0)),
            ),
            scratch_shapes=[
                pltpu.VMEM((tn, D), jnp.bfloat16),   # h (reused across vocab tiles)
                pltpu.VMEM((tn, 1), jnp.float32),    # running max
                pltpu.VMEM((tn, 1), jnp.float32),    # running sum-exp
                pltpu.VMEM((tn, 1), jnp.float32),    # label logit
                pltpu.VMEM((tn, 1), jnp.float32),    # sum_d h^2
            ],
        ),
        compiler_params=pltpu.CompilerParams(
            dimension_semantics=("parallel", "arbitrary"),
            vmem_limit_bytes=vmem_limit,
        ),
        cost_estimate=cost,
    )(emb, labels2d, w1_b, b1_f, w2_b)

    # Exact means over the true element counts, then the trainer-side combination:
    # loss = loss_ce + 0.001 * l2_loss.
    loss_ce = jnp.sum(nll) / N
    l2_loss = jnp.sum(hsq) / (N * D)
    total = loss_ce + L2_WEIGHT * l2_loss
    return loss_ce, l2_loss, total


# --------------------------------------------------------------------------------------
# Pure-JAX reference
# --------------------------------------------------------------------------------------
def _reference(tokens, labels, emb_table, w1, b1, w2):
    N = tokens.size
    emb = emb_table[tokens.reshape(N)]
    h = jax.nn.gelu(emb @ w1 + b1)
    logits = h @ w2
    logp = jax.nn.log_softmax(logits, axis=-1)
    nll = -jnp.take_along_axis(logp, labels.reshape(N, 1), axis=-1)
    loss_ce = jnp.mean(nll)
    l2 = jnp.mean(h * h)
    return loss_ce, l2, loss_ce + L2_WEIGHT * l2


if __name__ == "__main__":
    # Small, lane-dense demo: D and V are multiples of 128; the explicit tiles give a
    # (2 row tiles, 2 vocab tiles) grid so the multi-row-tile path AND the streaming
    # logsumexp across vocab tiles are both exercised.
    B, S, D, V = 4, 64, 128, 256
    key = jax.random.PRNGKey(0)
    k_emb, k_w1, k_b1, k_w2, k_tok, k_lbl = jax.random.split(key, 6)

    emb_table = jax.random.normal(k_emb, (V, D), jnp.float32) * 0.5
    w1 = jax.random.normal(k_w1, (D, D), jnp.float32) / np.sqrt(D)
    b1 = jax.random.normal(k_b1, (1, D), jnp.float32) * 0.02
    w2 = jax.random.normal(k_w2, (D, V), jnp.float32) / np.sqrt(D)
    tokens = jax.random.randint(k_tok, (B, S), 0, V, dtype=jnp.int32)
    labels = jax.random.randint(k_lbl, (B, S), 0, V, dtype=jnp.int32)

    # Weights live in bf16 across training steps: cast ONCE outside the per-step jit
    # (the per-step wrapper no longer re-casts the full tables every call).
    w1_bf16 = w1.astype(jnp.bfloat16)
    w2_bf16 = w2.astype(jnp.bfloat16)

    step = jax.jit(mesh_transformer_trainer_forward,
                   static_argnames=("row_tile", "vocab_tile"))
    loss_ce, l2_loss, total = jax.block_until_ready(
        step(tokens, labels, emb_table, w1_bf16, b1, w2_bf16,
             row_tile=128, vocab_tile=128)
    )

    ref_ce, ref_l2, ref_total = _reference(tokens, labels, emb_table, w1, b1, w2)
    # bf16 MXU operands (f32 accumulation) => loosened tolerance vs the f32 reference.
    np.testing.assert_allclose(np.asarray(loss_ce), np.asarray(ref_ce), rtol=2e-2, atol=2e-3)
    np.testing.assert_allclose(np.asarray(l2_loss), np.asarray(ref_l2), rtol=5e-2, atol=2e-3)
    np.testing.assert_allclose(np.asarray(total), np.asarray(ref_total), rtol=2e-2, atol=2e-3)

    print("KERNEL_OK")
</pallas_src>

<mosaic_0001>
module attributes {stable_mosaic.version = 11 : i64} {
  func.func @_trainer_kernel(%arg0: i32, %arg1: i32, %arg2: memref<128x128xbf16, #tpu.memory_space<vmem>>, %arg3: memref<128x1xi32, #tpu.memory_space<vmem>>, %arg4: memref<128x128xbf16, #tpu.memory_space<vmem>>, %arg5: memref<1x128xf32, #tpu.memory_space<vmem>>, %arg6: memref<128x128xbf16, #tpu.memory_space<vmem>>, %arg7: memref<128x1xf32, #tpu.memory_space<vmem>>, %arg8: memref<128x1xf32, #tpu.memory_space<vmem>>, %arg9: memref<128x128xbf16, #tpu.memory_space<vmem>>, %arg10: memref<128x1xf32, #tpu.memory_space<vmem>>, %arg11: memref<128x1xf32, #tpu.memory_space<vmem>>, %arg12: memref<128x1xf32, #tpu.memory_space<vmem>>, %arg13: memref<128x1xf32, #tpu.memory_space<vmem>>) attributes {dimension_semantics = [#tpu.dimension_semantics<parallel>, #tpu.dimension_semantics<arbitrary>], iteration_bounds = array<i64: 2, 2>, scalar_prefetch = 0 : i64, scratch_operands = 5 : i64, tpu.core_type = #tpu.core_type<tc>, window_params = [{transform_indices = @transform_0, window_bounds = array<i64: 128, 128>}, {transform_indices = @transform_1, window_bounds = array<i64: 128, 1>}, {pipeline_mode = #tpu.pipeline_mode<synchronous>, transform_indices = @transform_2, window_bounds = array<i64: 128, 128>}, {pipeline_mode = #tpu.pipeline_mode<synchronous>, transform_indices = @transform_3, window_bounds = array<i64: 1, 128>}, {transform_indices = @transform_4, window_bounds = array<i64: 128, 128>}, {transform_indices = @transform_5, window_bounds = array<i64: 128, 1>}, {transform_indices = @transform_6, window_bounds = array<i64: 128, 1>}]} {
    %c0_i32 = arith.constant 0 : i32
    %0 = arith.cmpi eq, %arg1, %c0_i32 : i32
    %1 = arith.extui %0 : i1 to i32
    %c0_i32_0 = arith.constant 0 : i32
    %2 = arith.cmpi ne, %1, %c0_i32_0 : i32
    scf.if %2 {
      %c0_23 = arith.constant 0 : index
      %c0_24 = arith.constant 0 : index
      %39 = vector.load %arg2[%c0_23, %c0_24] : memref<128x128xbf16, #tpu.memory_space<vmem>>, vector<128x128xbf16>
      %c0_25 = arith.constant 0 : index
      %c0_26 = arith.constant 0 : index
      %40 = vector.load %arg4[%c0_25, %c0_26] : memref<128x128xbf16, #tpu.memory_space<vmem>>, vector<128x128xbf16>
      %cst_27 = arith.constant dense<0.000000e+00> : vector<128x128xf32>
      %41 = tpu.matmul %39, %40, %cst_27 {dimension_numbers = #tpu.dot_dimension_numbers<[1], [0], [0], [1], [0, 0, 1, 1], [], []>} : vector<128x128xbf16>, vector<128x128xbf16>, vector<128x128xf32> -> vector<128x128xf32>
      %c0_28 = arith.constant 0 : index
      %c0_29 = arith.constant 0 : index
      %42 = vector.load %arg5[%c0_28, %c0_29] : memref<1x128xf32, #tpu.memory_space<vmem>>, vector<1x128xf32>
      %43 = vector.broadcast %42 : vector<1x128xf32> to vector<128x128xf32>
      %44 = arith.addf %41, %43 : vector<128x128xf32>
      %45 = arith.mulf %44, %44 : vector<128x128xf32>
      %46 = arith.mulf %44, %45 : vector<128x128xf32>
      %cst_30 = arith.constant 4.471500e-02 : f32
      %47 = vector.broadcast %cst_30 : f32 to vector<128x128xf32>
      %48 = arith.mulf %47, %46 : vector<128x128xf32>
      %49 = arith.addf %44, %48 : vector<128x128xf32>
      %cst_31 = arith.constant 0.797884583 : f32
      %50 = vector.broadcast %cst_31 : f32 to vector<128x128xf32>
      %51 = arith.mulf %50, %49 : vector<128x128xf32>
      %52 = math.tanh %51 : vector<128x128xf32>
      %cst_32 = arith.constant 1.000000e+00 : f32
      %53 = vector.broadcast %cst_32 : f32 to vector<128x128xf32>
      %54 = arith.addf %53, %52 : vector<128x128xf32>
      %cst_33 = arith.constant 5.000000e-01 : f32
      %55 = vector.broadcast %cst_33 : f32 to vector<128x128xf32>
      %56 = arith.mulf %55, %54 : vector<128x128xf32>
      %57 = arith.mulf %44, %56 : vector<128x128xf32>
      %58 = arith.mulf %57, %57 : vector<128x128xf32>
      %cst_34 = arith.constant dense<0.000000e+00> : vector<128xf32>
      %59 = vector.multi_reduction <add>, %58, %cst_34 [1] : vector<128x128xf32> to vector<128xf32>
      %60 = vector.shape_cast %59 : vector<128xf32> to vector<128x1xf32>
      %c0_35 = arith.constant 0 : index
      %c0_36 = arith.constant 0 : index
      %61 = vector.load %arg13[%c0_35, %c0_36] : memref<128x1xf32, #tpu.memory_space<vmem>>, vector<128x1xf32>
      tpu.vector_store %arg13[%c0_35, %c0_36], %60 {strides = array<i32>} : memref<128x1xf32, #tpu.memory_space<vmem>>, vector<128x1xf32>,
      %62 = arith.truncf %57 : vector<128x128xf32> to vector<128x128xbf16>
      %c0_37 = arith.constant 0 : index
      %c0_38 = arith.constant 0 : index
      %63 = vector.load %arg9[%c0_37, %c0_38] : memref<128x128xbf16, #tpu.memory_space<vmem>>, vector<128x128xbf16>
      tpu.vector_store %arg9[%c0_37, %c0_38], %62 {strides = array<i32>} : memref<128x128xbf16, #tpu.memory_space<vmem>>, vector<128x128xbf16>,
      %cst_39 = arith.constant 0xFF800000 : f32
      %64 = vector.broadcast %cst_39 : f32 to vector<128x1xf32>
      %c0_40 = arith.constant 0 : index
      %c0_41 = arith.constant 0 : index
      %65 = vector.load %arg10[%c0_40, %c0_41] : memref<128x1xf32, #tpu.memory_space<vmem>>, vector<128x1xf32>
      tpu.vector_store %arg10[%c0_40, %c0_41], %64 {strides = array<i32>} : memref<128x1xf32, #tpu.memory_space<vmem>>, vector<128x1xf32>,
      %cst_42 = arith.constant 0.000000e+00 : f32
      %66 = vector.broadcast %cst_42 : f32 to vector<128x1xf32>
      %c0_43 = arith.constant 0 : index
      %c0_44 = arith.constant 0 : index
      %67 = vector.load %arg11[%c0_43, %c0_44] : memref<128x1xf32, #tpu.memory_space<vmem>>, vector<128x1xf32>
      tpu.vector_store %arg11[%c0_43, %c0_44], %66 {strides = array<i32>} : memref<128x1xf32, #tpu.memory_space<vmem>>, vector<128x1xf32>,
      %cst_45 = arith.constant 0.000000e+00 : f32
      %68 = vector.broadcast %cst_45 : f32 to vector<128x1xf32>
      %c0_46 = arith.constant 0 : index
      %c0_47 = arith.constant 0 : index
      %69 = vector.load %arg12[%c0_46, %c0_47] : memref<128x1xf32, #tpu.memory_space<vmem>>, vector<128x1xf32>
      tpu.vector_store %arg12[%c0_46, %c0_47], %68 {strides = array<i32>} : memref<128x1xf32, #tpu.memory_space<vmem>>, vector<128x1xf32>,
    } else {
    }
    %c0 = arith.constant 0 : index
    %c0_1 = arith.constant 0 : index
    %3 = vector.load %arg9[%c0, %c0_1] : memref<128x128xbf16, #tpu.memory_space<vmem>>, vector<128x128xbf16>
    %c0_2 = arith.constant 0 : index
    %c0_3 = arith.constant 0 : index
    %4 = vector.load %arg6[%c0_2, %c0_3] : memref<128x128xbf16, #tpu.memory_space<vmem>>, vector<128x128xbf16>
    %cst = arith.constant dense<0.000000e+00> : vector<128x128xf32>
    %5 = tpu.matmul %3, %4, %cst {dimension_numbers = #tpu.dot_dimension_numbers<[1], [0], [0], [1], [0, 0, 1, 1], [], []>} : vector<128x128xbf16>, vector<128x128xbf16>, vector<128x128xf32> -> vector<128x128xf32>
    %c0_4 = arith.constant 0 : index
    %c0_5 = arith.constant 0 : index
    %6 = vector.load %arg3[%c0_4, %c0_5] : memref<128x1xi32, #tpu.memory_space<vmem>>, vector<128x1xi32>
    %c128_i32 = arith.constant 128 : i32
    %7 = arith.muli %arg1, %c128_i32 : i32
    %8 = vector.broadcast %7 : i32 to vector<128x1xi32>
    %9 = arith.subi %6, %8 : vector<128x1xi32>
    %10 = tpu.iota {dimensions = array<i32: 1>} : vector<128x128xi32>
    %c0_6 = arith.constant 0 : index
    %c0_7 = arith.constant 0 : index
    %11 = vector.load %arg12[%c0_6, %c0_7] : memref<128x1xf32, #tpu.memory_space<vmem>>, vector<128x1xf32>
    %12 = vector.broadcast %9 : vector<128x1xi32> to vector<128x128xi32>
    %13 = arith.cmpi eq, %10, %12 : vector<128x128xi32>
    %cst_8 = arith.constant 0.000000e+00 : f32
    %14 = vector.broadcast %cst_8 : f32 to vector<128x128xf32>
    %15 = arith.select %13, %5, %14 : vector<128x128xi1>, vector<128x128xf32>
    %cst_9 = arith.constant dense<0.000000e+00> : vector<128xf32>
    %16 = vector.multi_reduction <add>, %15, %cst_9 [1] : vector<128x128xf32> to vector<128xf32>
    %17 = vector.shape_cast %16 : vector<128xf32> to vector<128x1xf32>
    %18 = arith.addf %11, %17 : vector<128x1xf32>
    %c0_10 = arith.constant 0 : index
    %c0_11 = arith.constant 0 : index
    %19 = vector.load %arg12[%c0_10, %c0_11] : memref<128x1xf32, #tpu.memory_space<vmem>>, vector<128x1xf32>
    tpu.vector_store %arg12[%c0_10, %c0_11], %18 {strides = array<i32>} : memref<128x1xf32, #tpu.memory_space<vmem>>, vector<128x1xf32>,
    %c0_12 = arith.constant 0 : index
    %c0_13 = arith.constant 0 : index
    %20 = vector.load %arg10[%c0_12, %c0_13] : memref<128x1xf32, #tpu.memory_space<vmem>>, vector<128x1xf32>
    %cst_14 = arith.constant dense<0xFF800000> : vector<128xf32>
    %21 = vector.multi_reduction <maximumf>, %5, %cst_14 [1] : vector<128x128xf32> to vector<128xf32>
    %22 = vector.shape_cast %21 : vector<128xf32> to vector<128x1xf32>
    %23 = arith.maximumf %20, %22 : vector<128x1xf32>
    %c0_15 = arith.constant 0 : index
    %c0_16 = arith.constant 0 : index
    %24 = vector.load %arg11[%c0_15, %c0_16] : memref<128x1xf32, #tpu.memory_space<vmem>>, vector<128x1xf32>
    %25 = arith.subf %20, %23 : vector<128x1xf32>
    %26 = math.exp %25 : vector<128x1xf32>
    %27 = arith.mulf %24, %26 : vector<128x1xf32>
    %28 = vector.broadcast %23 : vector<128x1xf32> to vector<128x128xf32>
    %29 = arith.subf %5, %28 : vector<128x128xf32>
    %30 = math.exp %29 : vector<128x128xf32>
    %cst_17 = arith.constant dense<0.000000e+00> : vector<128xf32>
    %31 = vector.multi_reduction <add>, %30, %cst_17 [1] : vector<128x128xf32> to vector<128xf32>
    %32 = vector.shape_cast %31 : vector<128xf32> to vector<128x1xf32>
    %33 = arith.addf %27, %32 : vector<128x1xf32>
    %c0_18 = arith.constant 0 : index
    %c0_19 = arith.constant 0 : index
    %34 = vector.load %arg11[%c0_18, %c0_19] : memref<128x1xf32, #tpu.memory_space<vmem>>, vector<128x1xf32>
    tpu.vector_store %arg11[%c0_18, %c0_19], %33 {strides = array<i32>} : memref<128x1xf32, #tpu.memory_space<vmem>>, vector<128x1xf32>,
    %c0_20 = arith.constant 0 : index
    %c0_21 = arith.constant 0 : index
    %35 = vector.load %arg10[%c0_20, %c0_21] : memref<128x1xf32, #tpu.memory_space<vmem>>, vector<128x1xf32>
    tpu.vector_store %arg10[%c0_20, %c0_21], %23 {strides = array<i32>} : memref<128x1xf32, #tpu.memory_space<vmem>>, vector<128x1xf32>,
    %c1_i32 = arith.constant 1 : i32
    %36 = arith.cmpi eq, %arg1, %c1_i32 : i32
    %37 = arith.extui %36 : i1 to i32
    %c0_i32_22 = arith.constant 0 : i32
    %38 = arith.cmpi ne, %37, %c0_i32_22 : i32
    scf.if %38 {
      %c0_23 = arith.constant 0 : index
      %c0_24 = arith.constant 0 : index
      %39 = vector.load %arg10[%c0_23, %c0_24] : memref<128x1xf32, #tpu.memory_space<vmem>>, vector<128x1xf32>
      %c0_25 = arith.constant 0 : index
      %c0_26 = arith.constant 0 : index
      %40 = vector.load %arg11[%c0_25, %c0_26] : memref<128x1xf32, #tpu.memory_space<vmem>>, vector<128x1xf32>
      %41 = math.log %40 : vector<128x1xf32>
      %42 = arith.addf %39, %41 : vector<128x1xf32>
      %c0_27 = arith.constant 0 : index
      %c0_28 = arith.constant 0 : index
      %43 = vector.load %arg12[%c0_27, %c0_28] : memref<128x1xf32, #tpu.memory_space<vmem>>, vector<128x1xf32>
      %44 = arith.subf %42, %43 : vector<128x1xf32>
      %c0_29 = arith.constant 0 : index
      %c0_30 = arith.constant 0 : index
      %45 = vector.load %arg7[%c0_29, %c0_30] : memref<128x1xf32, #tpu.memory_space<vmem>>, vector<128x1xf32>
      tpu.vector_store %arg7[%c0_29, %c0_30], %44 {strides = array<i32>} : memref<128x1xf32, #tpu.memory_space<vmem>>, vector<128x1xf32>,
      %c0_31 = arith.constant 0 : index
      %c0_32 = arith.constant 0 : index
      %46 = vector.load %arg13[%c0_31, %c0_32] : memref<128x1xf32, #tpu.memory_space<vmem>>, vector<128x1xf32>
      %c0_33 = arith.constant 0 : index
      %c0_34 = arith.constant 0 : index
      %47 = vector.load %arg8[%c0_33, %c0_34] : memref<128x1xf32, #tpu.memory_space<vmem>>, vector<128x1xf32>
      tpu.vector_store %arg8[%c0_33, %c0_34], %46 {strides = array<i32>} : memref<128x1xf32, #tpu.memory_space<vmem>>, vector<128x1xf32>,
    } else {
    }
    return
  }
  func.func @transform_0(%arg0: i32, %arg1: i32) -> (i32, i32) {
    %c0_i32 = arith.constant 0 : i32
    %c0_i32_0 = arith.constant 0 : i32
    return %arg0, %c0_i32 : i32, i32
  }
  func.func @transform_1(%arg0: i32, %arg1: i32) -> (i32, i32) {
    %c0_i32 = arith.constant 0 : i32
    %c0_i32_0 = arith.constant 0 : i32
    return %arg0, %c0_i32 : i32, i32
  }
  func.func @transform_2(%arg0: i32, %arg1: i32) -> (i32, i32) {
    %c0_i32 = arith.constant 0 : i32
    %c0_i32_0 = arith.constant 0 : i32
    %c0_i32_1 = arith.constant 0 : i32
    return %c0_i32, %c0_i32_0 : i32, i32
  }
  func.func @transform_3(%arg0: i32, %arg1: i32) -> (i32, i32) {
    %c0_i32 = arith.constant 0 : i32
    %c0_i32_0 = arith.constant 0 : i32
    %c0_i32_1 = arith.constant 0 : i32
    return %c0_i32, %c0_i32_0 : i32, i32
  }
  func.func @transform_4(%arg0: i32, %arg1: i32) -> (i32, i32) {
    %c0_i32 = arith.constant 0 : i32
    %c0_i32_0 = arith.constant 0 : i32
    return %c0_i32, %arg1 : i32, i32
  }
  func.func @transform_5(%arg0: i32, %arg1: i32) -> (i32, i32) {
    %c0_i32 = arith.constant 0 : i32
    %c0_i32_0 = arith.constant 0 : i32
    return %arg0, %c0_i32 : i32, i32
  }
  func.func @transform_6(%arg0: i32, %arg1: i32) -> (i32, i32) {
    %c0_i32 = arith.constant 0 : i32
    %c0_i32_0 = arith.constant 0 : i32
    return %arg0, %c0_i32 : i32, i32
  }
}

</mosaic_0001>

<llo_original>
// kernel: mesh_transformer_trainer_forward.1
$region0: #{mesh_transformer_trainer_forward.1}
  #allocation0 [shape = 'u32[]', space=smem, size = 0x4, offset = 0x4, fixed_abs, tag = 'smem constant byte address 0x4 - core index']
  #allocation1 [shape = 'u32[144,128]{1,0:T(1,128)}', space=vmem, size = 0x12000, scoped, tag = 'internal scratch']
  #allocation2 [shape = 'bf16[128,128]{1,0:T(8,128)(2,1)}', space=vmem, size = 0x8000, scoped, tag = 'scratch operand']
  #allocation3 [shape = 'f32[128,1]{1,0:T(8,128)}', space=vmem, size = 0x10000, scoped, tag = 'scratch operand']
  #allocation4 [shape = 'f32[128,1]{1,0:T(8,128)}', space=vmem, size = 0x10000, scoped, tag = 'scratch operand']
  #allocation5 [shape = 'f32[128,1]{1,0:T(8,128)}', space=vmem, size = 0x10000, scoped, tag = 'scratch operand']
  #allocation6 [shape = 'f32[128,1]{1,0:T(8,128)}', space=vmem, size = 0x10000, scoped, tag = 'scratch operand']
  %s0 = inlined_call_operand.vmem [shape: bf16[256,128], index: 0, kind: input, shape index: {}]
  %s1 = inlined_call_operand.vmem [shape: s32[256,1], index: 1, kind: input, shape index: {}]
  %s2 = inlined_call_operand.vmem [shape: bf16[128,128], index: 2, kind: input, shape index: {}]
  %s3 = inlined_call_operand.vmem [shape: f32[1,128], index: 3, kind: input, shape index: {}]
  %s4 = inlined_call_operand.vmem [shape: bf16[128,256], index: 4, kind: input, shape index: {}]
  %s5 = inlined_call_operand.vmem [shape: f32[256,1], index: 5, kind: output, shape index: {0}]
  %s6 = inlined_call_operand.vmem [shape: f32[256,1], index: 6, kind: output, shape index: {1}]
  %7 = xla_tuple %s5, %s6
  %s8 = sld [smem:[#allocation0]]
  $region110: #{mesh_transformer_trainer_forward.1} parent=0
    _
  %s10 = ssub.s32 1, %s8
  %s11 = scalar_select 0, %s10, %s8
  $region1: #{mesh_transformer_trainer_forward.1} parent=0
    #allocation7 [shape = 'u8[65536]{0}', space=vmem, size = 0x10000, scoped, tag = 'input window, operand 4']
    loop: start=0, step=1, limit=6
    $region2: #{mesh_transformer_trainer_forward.1} parent=1 // loop_pre_header
      _
    $region3: #{mesh_transformer_trainer_forward.1} parent=1 // loop_header
      %s13 = sphi 0, %s17
      %p14 = scmp.ge.s32.totalorder %s13, 6
      %s20 = sphi 0, %s32
      %s21 = sphi 0, %s28
      %s22 = sphi 0, %s20
      %s23 = sphi 0, %s21
      %s24 = sphi 0, %s22
      %s25 = sphi 0, %s23
      %s35 = sphi 0, %s37
      %s38 = sphi 0, %s35
      %s39 = sphi 0, %s38
      %s55 = sphi 0, %s39
      %s61 = sphi 0, %s63
      %s64 = sphi 0, %s61
      %s65 = sphi 0, %s64
      %s81 = sphi 0, %s65
      %s85 = sphi 0, %s85
      %s87 = sphi 0, %s85
      %s88 = sphi 0, %s87
      %s102 = sphi 0, %s88
      %s106 = sphi 0, %s106
      %s108 = sphi 0, %s106
      %s109 = sphi 0, %s108
      %s123 = sphi 0, %s109
      %s129 = sphi 0, %s131
      %s132 = sphi 0, %s129
      %s133 = sphi 0, %s132
      %s149 = sphi 0, %s133
      %s155 = sphi 0, %s157
      %s158 = sphi 0, %s155
      %s159 = sphi 0, %s158
      %s175 = sphi 0, %s159
      %s181 = sphi 0, %s183
      %s184 = sphi 0, %s181
      %s185 = sphi 0, %s184
      %s201 = sphi 0, %s185
    $region4: #{mesh_transformer_trainer_forward.1} parent=1 // loop_header_branch
      %16 = sbr.rel (%p14) target = $region8
    $region5: #{mesh_transformer_trainer_forward.1} parent=1 // loop_body
      %s18 = ssub.s32 %s13, 1
      %s19 = ssub.s32 %s13, 2
      %s26 = sadd.s32 1, %s21
      %p27 = scmp.ge.s32.totalorder %s26, 2
      %s28 = scalar_select %p27, 0, %s26
      %s29 = sadd.s32 1, %s20
      %s30 = scalar_select %p27, %s29, %s20
      %p31 = scmp.ge.s32.totalorder %s30, 2
      %s32 = scalar_select %p31, 0, %s30
      %s33 = ssub.s32 %s20, %s32
      %p34 = scmp.eq.s32.totalorder %s33, 0
      %s36 = sadd.s32 %s35, 1
      %s37 = scalar_select %p34, %s35, %s36
      %p40 = pneg %p34
      %p41 = scmp.eq.s32.totalorder %s13, 3
      %p42 = por %p40, %p41
      %p43 = scmp.ne.s32.totalorder %s35, %s38
      %p44 = scmp.eq.s32.totalorder %s13, 0
      %p45 = por %p43, %p44
      %p46 = scmp.ne.s32.totalorder %s35, %s38
      %p47 = scmp.eq.s32.totalorder %s18, 3
      %p48 = por %p46, %p47
      %p49 = scmp.ne.s32.totalorder %s38, %s39
      %p50 = scmp.eq.s32.totalorder %s18, 0
      %p51 = por %p49, %p50
      %p52 = scmp.ne.s32.totalorder %s38, %s39
      %p53 = scmp.eq.s32.totalorder %s19, 3
      %p54 = por %p52, %p53
      %p56 = scmp.ne.s32.totalorder %s39, %s55
      %p57 = scmp.eq.s32.totalorder %s19, 0
      %p58 = por %p56, %p57
      %s59 = ssub.s32 %s20, %s32
      %p60 = scmp.eq.s32.totalorder %s59, 0
      %s62 = sadd.s32 %s61, 1
      %s63 = scalar_select %p60, %s61, %s62
      %p66 = pneg %p60
      %p67 = scmp.eq.s32.totalorder %s13, 3
      %p68 = por %p66, %p67
      %p69 = scmp.ne.s32.totalorder %s61, %s64
      %p70 = scmp.eq.s32.totalorder %s13, 0
      %p71 = por %p69, %p70
      %p72 = scmp.ne.s32.totalorder %s61, %s64
      %p73 = scmp.eq.s32.totalorder %s18, 3
      %p74 = por %p72, %p73
      %p75 = scmp.ne.s32.totalorder %s64, %s65
      %p76 = scmp.eq.s32.totalorder %s18, 0
      %p77 = por %p75, %p76
      %p78 = scmp.ne.s32.totalorder %s64, %s65
      %p79 = scmp.eq.s32.totalorder %s19, 3
      %p80 = por %p78, %p79
      %p82 = scmp.ne.s32.totalorder %s65, %s81
      %p83 = scmp.eq.s32.totalorder %s19, 0
      %p84 = por %p82, %p83
      %s86 = sadd.s32 %s85, 1
      %p89 = scmp.eq.s32.totalorder %s13, 3
      %p90 = scmp.ne.s32.totalorder %s85, %s87
      %p91 = scmp.eq.s32.totalorder %s13, 0
      %p92 = por %p90, %p91
      %p93 = scmp.ne.s32.totalorder %s85, %s87
      %p94 = scmp.eq.s32.totalorder %s18, 3
      %p95 = por %p93, %p94
      %p96 = scmp.ne.s32.totalorder %s87, %s88
      %p97 = scmp.eq.s32.totalorder %s18, 0
      %p98 = por %p96, %p97
      %p99 = scmp.ne.s32.totalorder %s87, %s88
      %p100 = scmp.eq.s32.totalorder %s19, 3
      %p101 = por %p99, %p100
      %p103 = scmp.ne.s32.totalorder %s88, %s102
      %p104 = scmp.eq.s32.totalorder %s19, 0
      %p105 = por %p103, %p104
      %s107 = sadd.s32 %s106, 1
      %p110 = scmp.eq.s32.totalorder %s13, 3
      %p111 = scmp.ne.s32.totalorder %s106, %s108
      %p112 = scmp.eq.s32.totalorder %s13, 0
      %p113 = por %p111, %p112
      %p114 = scmp.ne.s32.totalorder %s106, %s108
      %p115 = scmp.eq.s32.totalorder %s18, 3
      %p116 = por %p114, %p115
      %p117 = scmp.ne.s32.totalorder %s108, %s109
      %p118 = scmp.eq.s32.totalorder %s18, 0
      %p119 = por %p117, %p118
      %p120 = scmp.ne.s32.totalorder %s108, %s109
      %p121 = scmp.eq.s32.totalorder %s19, 3
      %p122 = por %p120, %p121
      %p124 = scmp.ne.s32.totalorder %s109, %s123
      %p125 = scmp.eq.s32.totalorder %s19, 0
      %p126 = por %p124, %p125
      %s127 = ssub.s32 %s21, %s28
      %p128 = scmp.eq.s32.totalorder %s127, 0
      %s130 = sadd.s32 %s129, 1
      %s131 = scalar_select %p128, %s129, %s130
      %p134 = pneg %p128
      %p135 = scmp.eq.s32.totalorder %s13, 3
      %p136 = por %p134, %p135
      %p137 = scmp.ne.s32.totalorder %s129, %s132
      %p138 = scmp.eq.s32.totalorder %s13, 0
      %p139 = por %p137, %p138
      %p140 = scmp.ne.s32.totalorder %s129, %s132
      %p141 = scmp.eq.s32.totalorder %s18, 3
      %p142 = por %p140, %p141
      %p143 = scmp.ne.s32.totalorder %s132, %s133
      %p144 = scmp.eq.s32.totalorder %s18, 0
      %p145 = por %p143, %p144
      %p146 = scmp.ne.s32.totalorder %s132, %s133
      %p147 = scmp.eq.s32.totalorder %s19, 3
      %p148 = por %p146, %p147
      %p150 = scmp.ne.s32.totalorder %s133, %s149
      %p151 = scmp.eq.s32.totalorder %s19, 0
      %p152 = por %p150, %p151
      %s153 = ssub.s32 %s20, %s32
      %p154 = scmp.eq.s32.totalorder %s153, 0
      %s156 = sadd.s32 %s155, 1
      %s157 = scalar_select %p154, %s155, %s156
      %p160 = pneg %p154
      %p161 = scmp.eq.s32.totalorder %s13, 3
      %p162 = por %p160, %p161
      %p163 = scmp.ne.s32.totalorder %s155, %s158
      %p164 = scmp.eq.s32.totalorder %s13, 0
      %p165 = por %p163, %p164
      %p166 = scmp.ne.s32.totalorder %s155, %s158
      %p167 = scmp.eq.s32.totalorder %s18, 3
      %p168 = por %p166, %p167
      %p169 = scmp.ne.s32.totalorder %s158, %s159
      %p170 = scmp.eq.s32.totalorder %s18, 0
      %p171 = por %p169, %p170
      %p172 = scmp.ne.s32.totalorder %s158, %s159
      %p173 = scmp.eq.s32.totalorder %s19, 3
      %p174 = por %p172, %p173
      %p176 = scmp.ne.s32.totalorder %s159, %s175
      %p177 = scmp.eq.s32.totalorder %s19, 0
      %p178 = por %p176, %p177
      %s179 = ssub.s32 %s20, %s32
      %p180 = scmp.eq.s32.totalorder %s179, 0
      %s182 = sadd.s32 %s181, 1
      %s183 = scalar_select %p180, %s181, %s182
      %p186 = pneg %p180
      %p187 = scmp.eq.s32.totalorder %s13, 3
      %p188 = por %p186, %p187
      %p189 = scmp.ne.s32.totalorder %s181, %s184
      %p190 = scmp.eq.s32.totalorder %s13, 0
      %p191 = por %p189, %p190
      %p192 = scmp.ne.s32.totalorder %s181, %s184
      %p193 = scmp.eq.s32.totalorder %s18, 3
      %p194 = por %p192, %p193
      %p195 = scmp.ne.s32.totalorder %s184, %s185
      %p196 = scmp.eq.s32.totalorder %s18, 0
      %p197 = por %p195, %p196
      %p198 = scmp.ne.s32.totalorder %s184, %s185
      %p199 = scmp.eq.s32.totalorder %s19, 3
      %p200 = por %p198, %p199
      %p202 = scmp.ne.s32.totalorder %s185, %s201
      %p203 = scmp.eq.s32.totalorder %s19, 0
      %p204 = por %p202, %p203
      %p205 = scmp.le.s32.totalorder 1, %s13
      %p206 = scmp.lt.s32.totalorder %s13, 5
      %p207 = pnand %p205, %p206
      %p208 = pneg %p207
      // Predicated region
      $region9: #{mesh_transformer_trainer_forward.1} parent=5 // pred_check
        _
      $region10: #{mesh_transformer_trainer_forward.1} parent=5 // pred_check_branch
        %210 = sbr.rel (%p207) target = $region12
      $region11: #{mesh_transformer_trainer_forward.1} parent=5 // pred_region
        %s211 = ssub.s32 %s13, 1
        // Predicated region
        $region13: #{mesh_transformer_trainer_forward.1} parent=11 // pred_check
          %p212 = pneg %p98
        $region14: #{mesh_transformer_trainer_forward.1} parent=11 // pred_check_branch
          %214 = sbr.rel (%p212) target = $region16
        $region15: #{mesh_transformer_trainer_forward.1} parent=11 // pred_region
          _
        $region16: #{mesh_transformer_trainer_forward.1} parent=11 // pred_fallthru
          _
        // Predicated region
        $region17: #{mesh_transformer_trainer_forward.1} parent=11 // pred_check
          %p215 = pneg %p119
        $region18: #{mesh_transformer_trainer_forward.1} parent=11 // pred_check_branch
          %217 = sbr.rel (%p215) target = $region20
        $region19: #{mesh_transformer_trainer_forward.1} parent=11 // pred_region
          _
        $region20: #{mesh_transformer_trainer_forward.1} parent=11 // pred_fallthru
          _
      $region12: #{mesh_transformer_trainer_forward.1} parent=5 // pred_fallthru
        _
      %p218 = scmp.lt.s32.totalorder %s13, 4
      // Predicated region
      $region21: #{mesh_transformer_trainer_forward.1} parent=5 // pred_check
        %p219 = pneg %p218
      $region22: #{mesh_transformer_trainer_forward.1} parent=5 // pred_check_branch
        %221 = sbr.rel (%p219) target = $region24
      $region23: #{mesh_transformer_trainer_forward.1} parent=5 // pred_region
        // Predicated region
        $region25: #{mesh_transformer_trainer_forward.1} parent=23 // pred_check
          %p222 = pneg %p45
        $region26: #{mesh_transformer_trainer_forward.1} parent=23 // pred_check_branch
          %224 = sbr.rel (%p222) target = $region28
        $region27: #{mesh_transformer_trainer_forward.1} parent=23 // pred_region
          %s225 = smul.u32 16, %s20
          %p226 = scmp.lt.s32.totalorder %s225, 31
          %s227 = scalar_select %p226, %s225, 31
          %s228 = smul.addr %s227, 4
          %s229 = scalar_lea.vmem %s0, %s228
          %s230 = smul.u32 16, %s20
        $region28: #{mesh_transformer_trainer_forward.1} parent=23 // pred_fallthru
          _
        // Predicated region
        $region29: #{mesh_transformer_trainer_forward.1} parent=23 // pred_check
          %p231 = pneg %p71
        $region30: #{mesh_transformer_trainer_forward.1} parent=23 // pred_check_branch
          %233 = sbr.rel (%p231) target = $region32
        $region31: #{mesh_transformer_trainer_forward.1} parent=23 // pred_region
          %s234 = smul.u32 16, %s20
          %p235 = scmp.lt.s32.totalorder %s234, 31
          %s236 = scalar_select %p235, %s234, 31
          %s237 = smul.addr %s236, 8
          %s238 = scalar_lea.vmem %s1, %s237
          %s239 = smul.u32 16, %s20
        $region32: #{mesh_transformer_trainer_forward.1} parent=23 // pred_fallthru
          _
        // Predicated region
        $region33: #{mesh_transformer_trainer_forward.1} parent=23 // pred_check
          %p240 = pneg %p139
        $region34: #{mesh_transformer_trainer_forward.1} parent=23 // pred_check_branch
          %242 = sbr.rel (%p240) target = $region36
        $region35: #{mesh_transformer_trainer_forward.1} parent=23 // pred_region
          %s243 = sand.u32 %s129, 1
          %s244 = sand.u32 %s129, 1
          %s245 = smul.addr %s244, 64
          %s246 = scalar_lea.vmem [#allocation7], %s245
          %s247 = smul.addr %s21, 4
          %s248 = scalar_lea.vmem %s4, %s247
          // Predicated region
          $region37: #{mesh_transformer_trainer_forward.1} parent=35 // pred_check
            _
          $region38: #{mesh_transformer_trainer_forward.1} parent=35 // pred_check_branch
            %250 = sbr.rel (0) target = $region40
          $region39: #{mesh_transformer_trainer_forward.1} parent=35 // pred_region
            // Predicated region
            $region41: #{mesh_transformer_trainer_forward.1} parent=39 // pred_check
              _
            $region42: #{mesh_transformer_trainer_forward.1} parent=39 // pred_check_branch
              %252 = sbr.rel target = $region44
            $region43: #{mesh_transformer_trainer_forward.1} parent=39 // pred_region
              // Predicated region
              $region56: #{mesh_transformer_trainer_forward.1} parent=43 // pred_check
                _
              $region57: #{mesh_transformer_trainer_forward.1} parent=43 // pred_check_branch
                %298 = sbr.rel (0) target = $region59
              $region58: #{mesh_transformer_trainer_forward.1} parent=43 // pred_region
                loop: start=0, step=1, limit=1
                $region60: #{mesh_transformer_trainer_forward.1} parent=58 // loop_pre_header
                  _
                $region61: #{mesh_transformer_trainer_forward.1} parent=58 // loop_header
                  %s300 = sphi 0, %s304
                  %p301 = scmp.ge.s32.totalorder %s300, 1
                  %s305 = sphi %s248, %s248
                  %s306 = sphi %s246, %s246
                $region62: #{mesh_transformer_trainer_forward.1} parent=58 // loop_header_branch
                  %303 = sbr.rel (%p301) target = $region66
                $region63: #{mesh_transformer_trainer_forward.1} parent=58 // loop_body
                  _
                $region64: #{mesh_transformer_trainer_forward.1} parent=58 // loop_footer
                  %s304 = sadd.s32 1, %s300
                $region65: #{mesh_transformer_trainer_forward.1} parent=58 // loop_footer_branch
                  %299 = sbr.rel target = $region61
                $region66: #{mesh_transformer_trainer_forward.1} parent=58 // loop_exit
                  _
                %s308 = ssub.s32 16, 1
                loop: start=0, step=1, limit=1
                $region67: #{mesh_transformer_trainer_forward.1} parent=58 // loop_pre_header
                  _
                $region68: #{mesh_transformer_trainer_forward.1} parent=58 // loop_header
                  %s310 = sphi 0, %s314
                  %p311 = scmp.ge.s32.totalorder %s310, 1
                  %s315 = sphi %s248, %s248
                  %s316 = sphi %s246, %s246
                $region69: #{mesh_transformer_trainer_forward.1} parent=58 // loop_header_branch
                  %313 = sbr.rel (%p311) target = $region73
                $region70: #{mesh_transformer_trainer_forward.1} parent=58 // loop_body
                  %v317 = vld [vmem:[%s315] sm:%s308]
                  %318 = vst [vmem:[%s316] sm:%s308] %v317
                  %v319 = vld [vmem:[%s315 + $0x8] sm:%s308]
                  %320 = vst [vmem:[%s316 + $0x4] sm:%s308] %v319
                  %v321 = vld [vmem:[%s315 + $0x10] sm:%s308]
                  %322 = vst [vmem:[%s316 + $0x8] sm:%s308] %v321
                  %v323 = vld [vmem:[%s315 + $0x18] sm:%s308]
                  %324 = vst [vmem:[%s316 + $0xc] sm:%s308] %v323
                  %v325 = vld [vmem:[%s315 + $0x20] sm:%s308]
                  %326 = vst [vmem:[%s316 + $0x10] sm:%s308] %v325
                  %v327 = vld [vmem:[%s315 + $0x28] sm:%s308]
                  %328 = vst [vmem:[%s316 + $0x14] sm:%s308] %v327
                  %v329 = vld [vmem:[%s315 + $0x30] sm:%s308]
                  %330 = vst [vmem:[%s316 + $0x18] sm:%s308] %v329
                  %v331 = vld [vmem:[%s315 + $0x38] sm:%s308]
                  %332 = vst [vmem:[%s316 + $0x1c] sm:%s308] %v331
                  %v333 = vld [vmem:[%s315 + $0x40] sm:%s308]
                  %334 = vst [vmem:[%s316 + $0x20] sm:%s308] %v333
                  %v335 = vld [vmem:[%s315 + $0x48] sm:%s308]
                  %336 = vst [vmem:[%s316 + $0x24] sm:%s308] %v335
                  %v337 = vld [vmem:[%s315 + $0x50] sm:%s308]
                  %338 = vst [vmem:[%s316 + $0x28] sm:%s308] %v337
                  %v339 = vld [vmem:[%s315 + $0x58] sm:%s308]
                  %340 = vst [vmem:[%s316 + $0x2c] sm:%s308] %v339
                  %v341 = vld [vmem:[%s315 + $0x60] sm:%s308]
                  %342 = vst [vmem:[%s316 + $0x30] sm:%s308] %v341
                  %v343 = vld [vmem:[%s315 + $0x68] sm:%s308]
                  %344 = vst [vmem:[%s316 + $0x34] sm:%s308] %v343
                  %v345 = vld [vmem:[%s315 + $0x70] sm:%s308]
                  %346 = vst [vmem:[%s316 + $0x38] sm:%s308] %v345
                  %v347 = vld [vmem:[%s315 + $0x78] sm:%s308]
                  %348 = vst [vmem:[%s316 + $0x3c] sm:%s308] %v347
                $region71: #{mesh_transformer_trainer_forward.1} parent=58 // loop_footer
                  %s314 = sadd.s32 1, %s310
                $region72: #{mesh_transformer_trainer_forward.1} parent=58 // loop_footer_branch
                  %309 = sbr.rel target = $region68
                $region73: #{mesh_transformer_trainer_forward.1} parent=58 // loop_exit
                  _
              $region59: #{mesh_transformer_trainer_forward.1} parent=43 // pred_fallthru
                _
            $region44: #{mesh_transformer_trainer_forward.1} parent=39 // pred_fallthru
              _
            // Predicated region
            $region45: #{mesh_transformer_trainer_forward.1} parent=39 // pred_check
              _
            $region46: #{mesh_transformer_trainer_forward.1} parent=39 // pred_check_branch
              %254 = sbr.rel (0) target = $region48
            $region47: #{mesh_transformer_trainer_forward.1} parent=39 // pred_region
              %s256 = ssub.s32 16, 1
              loop: start=0, step=1, limit=1
              $region49: #{mesh_transformer_trainer_forward.1} parent=47 // loop_pre_header
                _
              $region50: #{mesh_transformer_trainer_forward.1} parent=47 // loop_header
                %s258 = sphi 0, %s262
                %p259 = scmp.ge.s32.totalorder %s258, 1
                %s263 = sphi %s248, %s248
                %s264 = sphi %s246, %s246
              $region51: #{mesh_transformer_trainer_forward.1} parent=47 // loop_header_branch
                %261 = sbr.rel (%p259) target = $region55
              $region52: #{mesh_transformer_trainer_forward.1} parent=47 // loop_body
                %v265 = vld [vmem:[%s263] sm:%s256]
                %266 = vst [vmem:[%s264] sm:%s256] %v265
                %v267 = vld [vmem:[%s263 + $0x8] sm:%s256]
                %268 = vst [vmem:[%s264 + $0x4] sm:%s256] %v267
                %v269 = vld [vmem:[%s263 + $0x10] sm:%s256]
                %270 = vst [vmem:[%s264 + $0x8] sm:%s256] %v269
                %v271 = vld [vmem:[%s263 + $0x18] sm:%s256]
                %272 = vst [vmem:[%s264 + $0xc] sm:%s256] %v271
                %v273 = vld [vmem:[%s263 + $0x20] sm:%s256]
                %274 = vst [vmem:[%s264 + $0x10] sm:%s256] %v273
                %v275 = vld [vmem:[%s263 + $0x28] sm:%s256]
                %276 = vst [vmem:[%s264 + $0x14] sm:%s256] %v275
                %v277 = vld [vmem:[%s263 + $0x30] sm:%s256]
                %278 = vst [vmem:[%s264 + $0x18] sm:%s256] %v277
                %v279 = vld [vmem:[%s263 + $0x38] sm:%s256]
                %280 = vst [vmem:[%s264 + $0x1c] sm:%s256] %v279
                %v281 = vld [vmem:[%s263 + $0x40] sm:%s256]
                %282 = vst [vmem:[%s264 + $0x20] sm:%s256] %v281
                %v283 = vld [vmem:[%s263 + $0x48] sm:%s256]
                %284 = vst [vmem:[%s264 + $0x24] sm:%s256] %v283
                %v285 = vld [vmem:[%s263 + $0x50] sm:%s256]
                %286 = vst [vmem:[%s264 + $0x28] sm:%s256] %v285
                %v287 = vld [vmem:[%s263 + $0x58] sm:%s256]
                %288 = vst [vmem:[%s264 + $0x2c] sm:%s256] %v287
                %v289 = vld [vmem:[%s263 + $0x60] sm:%s256]
                %290 = vst [vmem:[%s264 + $0x30] sm:%s256] %v289
                %v291 = vld [vmem:[%s263 + $0x68] sm:%s256]
                %292 = vst [vmem:[%s264 + $0x34] sm:%s256] %v291
                %v293 = vld [vmem:[%s263 + $0x70] sm:%s256]
                %294 = vst [vmem:[%s264 + $0x38] sm:%s256] %v293
                %v295 = vld [vmem:[%s263 + $0x78] sm:%s256]
                %296 = vst [vmem:[%s264 + $0x3c] sm:%s256] %v295
              $region53: #{mesh_transformer_trainer_forward.1} parent=47 // loop_footer
                %s262 = sadd.s32 1, %s258
              $region54: #{mesh_transformer_trainer_forward.1} parent=47 // loop_footer_branch
                %257 = sbr.rel target = $region50
              $region55: #{mesh_transformer_trainer_forward.1} parent=47 // loop_exit
                _
            $region48: #{mesh_transformer_trainer_forward.1} parent=39 // pred_fallthru
              _
          $region40: #{mesh_transformer_trainer_forward.1} parent=35 // pred_fallthru
            _
          %349 = vnop
        $region36: #{mesh_transformer_trainer_forward.1} parent=23 // pred_fallthru
          _
      $region24: #{mesh_transformer_trainer_forward.1} parent=5 // pred_fallthru
        _
      %p350 = scmp.le.s32.totalorder 1, %s13
      %p351 = scmp.lt.s32.totalorder %s13, 5
      %p352 = pnand %p350, %p351
      %p353 = pneg %p352
      // Predicated region
      $region74: #{mesh_transformer_trainer_forward.1} parent=5 // pred_check
        _
      $region75: #{mesh_transformer_trainer_forward.1} parent=5 // pred_check_branch
        %355 = sbr.rel (%p352) target = $region77
      $region76: #{mesh_transformer_trainer_forward.1} parent=5 // pred_region
        %s356 = ssub.s32 %s13, 1
        %s357 = sand.u32 %s132, 1
        %s358 = sand.u32 %s132, 1
        %s359 = smul.addr %s358, 64
        %s360 = scalar_lea.vmem [#allocation7], %s359
        // Predicated region
        $region78: #{mesh_transformer_trainer_forward.1} parent=76 // pred_check
          %p361 = pneg %p145
        $region79: #{mesh_transformer_trainer_forward.1} parent=76 // pred_check_branch
          %363 = sbr.rel (%p361) target = $region81
        $region80: #{mesh_transformer_trainer_forward.1} parent=76 // pred_region
          _
        $region81: #{mesh_transformer_trainer_forward.1} parent=76 // pred_fallthru
          _
        %s364 = smul.u32 16, %s22
        %p365 = scmp.lt.s32.totalorder %s364, 31
        %s366 = scalar_select %p365, %s364, 31
        %s367 = smul.addr %s366, 4
        %s368 = scalar_lea.vmem %s0, %s367
        %p369 = pneg %p51
        %p370 = pneg %p48
        %s371 = smul.u32 16, %s22
        %p372 = scmp.lt.s32.totalorder %s371, 31
        %s373 = scalar_select %p372, %s371, 31
        %s374 = smul.addr %s373, 8
        %s375 = scalar_lea.vmem %s1, %s374
        %p376 = pneg %p77
        %p377 = pneg %p74
        %p378 = pneg %p98
        %p379 = pneg %p95
        %p380 = pneg %p119
        %p381 = pneg %p116
        %s382 = sand.u32 %s132, 1
        %s383 = sand.u32 %s132, 1
        %s384 = smul.addr %s383, 64
        %s385 = scalar_lea.vmem [#allocation7], %s384
        %p386 = pneg %p145
        %p387 = pneg %p142
        %p388 = pneg %p171
        %p389 = pneg %p168
        %s390 = smul.u32 16, %s22
        %p391 = scmp.lt.s32.totalorder %s390, 31
        %s392 = scalar_select %p391, %s390, 31
        %s393 = smul.addr %s392, 8
        %s394 = scalar_lea.vmem %s5, %s393
        %p395 = pneg %p197
        %p396 = pneg %p194
        %s397 = smul.u32 16, %s22
        %p398 = scmp.lt.s32.totalorder %s397, 31
        %s399 = scalar_select %p398, %s397, 31
        %s400 = smul.addr %s399, 8
        %s401 = scalar_lea.vmem %s6, %s400
        %s402 = smul.u32 16, %s22
        %p403 = scmp.lt.s32.totalorder %s402, 31
        %s404 = scalar_select %p403, %s402, 31
        %s405 = smul.addr %s404, 4
        %s406 = scalar_lea.vmem %s0, %s405
        %s407 = smul.u32 16, %s22
        %s408 = smul.u32 16, %s22
        %p409 = scmp.lt.s32.totalorder %s408, 31
        %s410 = scalar_select %p409, %s408, 31
        %s411 = smul.addr %s410, 8
        %s412 = scalar_lea.vmem %s1, %s411
        %s413 = smul.u32 16, %s22
        %s414 = smul.u32 16, %s22
        %p415 = scmp.lt.s32.totalorder %s414, 31
        %s416 = scalar_select %p415, %s414, 31
        %s417 = smul.addr %s416, 8
        %s418 = scalar_lea.vmem %s5, %s417
        %s419 = smul.u32 16, %s22
        %s420 = smul.u32 16, %s22
        %p421 = scmp.lt.s32.totalorder %s420, 31
        %s422 = scalar_select %p421, %s420, 31
        %s423 = smul.addr %s422, 8
        %s424 = scalar_lea.vmem %s6, %s423
        %s425 = smul.u32 16, %s22
        %p427 = scmp.eq.s32.totalorder %s23, 0
        // Predicated region
        $region82: #{mesh_transformer_trainer_forward.1} parent=76 // pred_check
          %p428 = pneg %p427
        $region83: #{mesh_transformer_trainer_forward.1} parent=76 // pred_check_branch
          %430 = sbr.rel (%p428) target = $region85
        $region84: #{mesh_transformer_trainer_forward.1} parent=76 // pred_region
          %v431 = vld [vmem:[%s406] sm:$0xf]
          %v432 = vld [vmem:[%s406 + $0x4] sm:$0xf]
          %v433 = vld [vmem:[%s406 + $0x8] sm:$0xf]
          %v434 = vld [vmem:[%s406 + $0xc] sm:$0xf]
          %v435 = vld [vmem:[%s406 + $0x10] sm:$0xf]
          %v436 = vld [vmem:[%s406 + $0x14] sm:$0xf]
          %v437 = vld [vmem:[%s406 + $0x18] sm:$0xf]
          %v438 = vld [vmem:[%s406 + $0x1c] sm:$0xf]
          %v439 = vld [vmem:[%s406 + $0x20] sm:$0xf]
          %v440 = vld [vmem:[%s406 + $0x24] sm:$0xf]
          %v441 = vld [vmem:[%s406 + $0x28] sm:$0xf]
          %v442 = vld [vmem:[%s406 + $0x2c] sm:$0xf]
          %v443 = vld [vmem:[%s406 + $0x30] sm:$0xf]
          %v444 = vld [vmem:[%s406 + $0x34] sm:$0xf]
          %v445 = vld [vmem:[%s406 + $0x38] sm:$0xf]
          %v446 = vld [vmem:[%s406 + $0x3c] sm:$0xf]
          %v447 = vld [vmem:[%s2] sm:$0xf]
          %v448 = vld [vmem:[%s2 + $0x4] sm:$0xf]
          %v449 = vld [vmem:[%s2 + $0x8] sm:$0xf]
          %v450 = vld [vmem:[%s2 + $0xc] sm:$0xf]
          %v451 = vld [vmem:[%s2 + $0x10] sm:$0xf]
          %v452 = vld [vmem:[%s2 + $0x14] sm:$0xf]
          %v453 = vld [vmem:[%s2 + $0x18] sm:$0xf]
          %v454 = vld [vmem:[%s2 + $0x1c] sm:$0xf]
          %v455 = vld [vmem:[%s2 + $0x20] sm:$0xf]
          %v456 = vld [vmem:[%s2 + $0x24] sm:$0xf]
          %v457 = vld [vmem:[%s2 + $0x28] sm:$0xf]
          %v458 = vld [vmem:[%s2 + $0x2c] sm:$0xf]
          %v459 = vld [vmem:[%s2 + $0x30] sm:$0xf]
          %v460 = vld [vmem:[%s2 + $0x34] sm:$0xf]
          %v461 = vld [vmem:[%s2 + $0x38] sm:$0xf]
          %v462 = vld [vmem:[%s2 + $0x3c] sm:$0xf]
          %v463 = vld [vmem:[%s3] sm:$0x1]
          %v465 = vlaneseq
          %v466 = vshrl.u32 %v465, 7
          %v467 = vsub.s32 0, %v466
          %v468 = vrot.slane %v463, %v467
          %v486 = vunpack.c.l.b16 %v431
          %v487 = vunpack.c.l.b16 %v432
          %v488 = vunpack.c.l.b16 %v433
          %v489 = vunpack.c.l.b16 %v434
          %v490 = vunpack.c.l.b16 %v435
          %v491 = vunpack.c.l.b16 %v436
          %v492 = vunpack.c.l.b16 %v437
          %v493 = vunpack.c.l.b16 %v438
          %v494 = vunpack.c.l.b16 %v439
          %v495 = vunpack.c.l.b16 %v440
          %v496 = vunpack.c.l.b16 %v441
          %v497 = vunpack.c.l.b16 %v442
          %v498 = vunpack.c.l.b16 %v443
          %v499 = vunpack.c.l.b16 %v444
          %v500 = vunpack.c.l.b16 %v445
          %v501 = vunpack.c.l.b16 %v446
          %v502 = vpack.c.b16 %v487, %v486
          %v503 = vpack.c.b16 %v489, %v488
          %v504 = vpack.c.b16 %v491, %v490
          %v505 = vpack.c.b16 %v493, %v492
          %v506 = vpack.c.b16 %v495, %v494
          %v507 = vpack.c.b16 %v497, %v496
          %v508 = vpack.c.b16 %v499, %v498
          %v509 = vpack.c.b16 %v501, %v500
          %v534 = vunpack.c.l.b16 %v447
          %v535 = vunpack.c.l.b16 %v448
          %v536 = vunpack.c.l.b16 %v449
          %v537 = vunpack.c.l.b16 %v450
          %v538 = vunpack.c.l.b16 %v451
          %v539 = vunpack.c.l.b16 %v452
          %v540 = vunpack.c.l.b16 %v453
          %v541 = vunpack.c.l.b16 %v454
          %v542 = vunpack.c.l.b16 %v455
          %v543 = vunpack.c.l.b16 %v456
          %v544 = vunpack.c.l.b16 %v457
          %v545 = vunpack.c.l.b16 %v458
          %v546 = vunpack.c.l.b16 %v459
          %v547 = vunpack.c.l.b16 %v460
          %v548 = vunpack.c.l.b16 %v461
          %v549 = vunpack.c.l.b16 %v462
          %v550 = vpack.c.b16 %v535, %v534
          %v551 = vpack.c.b16 %v537, %v536
          %v552 = vpack.c.b16 %v539, %v538
          %v553 = vpack.c.b16 %v541, %v540
          %v554 = vpack.c.b16 %v543, %v542
          %v555 = vpack.c.b16 %v545, %v544
          %v556 = vpack.c.b16 %v547, %v546
          %v557 = vpack.c.b16 %v549, %v548
          %566 = vmatprep.subr.bf16.mxu0 0
          %567 = vmatpush1.bf16.msra.mxu0 %v557
          %568 = vmatprep.subr.bf16.mxu0 0
          %569 = vmatpush1.bf16.msra.mxu0 %v556
          %570 = vmatprep.subr.bf16.mxu0 0
          %571 = vmatpush1.bf16.msra.mxu0 %v555
          %572 = vmatprep.subr.bf16.mxu0 0
          %573 = vmatpush1.bf16.msra.mxu0 %v554
          %574 = vmatprep.subr.bf16.mxu0 0
          %575 = vmatpush1.bf16.msra.mxu0 %v553
          %576 = vmatprep.subr.bf16.mxu0 0
          %577 = vmatpush1.bf16.msra.mxu0 %v552
          %578 = vmatprep.subr.bf16.mxu0 0
          %579 = vmatpush1.bf16.msra.mxu0 %v551
          %580 = vmatprep.subr.bf16.mxu0 0
          %581 = vmatpush1.bf16.msra.mxu0 %v550
          %582 = vmatprep.subr.bf16.mxu0 0
          %583 = vmatpush2.bf16.msra.mxu0 0
          %584 = vmatprep.subr.bf16.mxu0 0
          %585 = vmatpush2.bf16.msra.mxu0 0
          %586 = vmatprep.subr.bf16.mxu0 0
          %587 = vmatpush2.bf16.msra.mxu0 0
          %588 = vmatprep.subr.bf16.mxu0 0
          %589 = vmatpush2.bf16.msra.mxu0 0
          %590 = vmatprep.subr.bf16.mxu0 0
          %591 = vmatpush2.bf16.msra.mxu0 0
          %592 = vmatprep.subr.bf16.mxu0 0
          %593 = vmatpush2.bf16.msra.mxu0 0
          %594 = vmatprep.subr.bf16.mxu0 0
          %595 = vmatpush2.bf16.msra.mxu0 0
          %596 = vmatprep.subr.bf16.mxu0 0
          %597 = vmatpush2.bf16.msra.mxu0 0
          %598 = vmatprep.mubr.bf16.mxu0 0
          %599 = vmatmul.mubr.bf16.gmra.mxu0 %v502
          %v600 = vpop.f32.mrf.mxu0
          %v601 = vadd.f32 %v468, %v600
          %v602 = vpop.f32.mrf.mxu0
          %v603 = vpop.f32.mrf.mxu0
          %v604 = vadd.f32 %v468, %v603
          %v605 = vpop.f32.mrf.mxu0
          %606 = vmatprep.mubr.bf16.mxu0 0
          %607 = vmatmul.mubr.bf16.gmra.mxu0 %v503
          %v608 = vpop.f32.mrf.mxu0
          %v609 = vadd.f32 %v468, %v608
          %v610 = vpop.f32.mrf.mxu0
          %v611 = vpop.f32.mrf.mxu0
          %v612 = vadd.f32 %v468, %v611
          %v613 = vpop.f32.mrf.mxu0
          %614 = vmatprep.mubr.bf16.mxu0 0
          %615 = vmatmul.mubr.bf16.gmra.mxu0 %v504
          %v616 = vpop.f32.mrf.mxu0
          %v617 = vadd.f32 %v468, %v616
          %v618 = vpop.f32.mrf.mxu0
          %v619 = vpop.f32.mrf.mxu0
          %v620 = vadd.f32 %v468, %v619
          %v621 = vpop.f32.mrf.mxu0
          %622 = vmatprep.mubr.bf16.mxu0 0
          %623 = vmatmul.mubr.bf16.gmra.mxu0 %v505
          %v624 = vpop.f32.mrf.mxu0
          %v625 = vadd.f32 %v468, %v624
          %v626 = vpop.f32.mrf.mxu0
          %v627 = vpop.f32.mrf.mxu0
          %v628 = vadd.f32 %v468, %v627
          %v629 = vpop.f32.mrf.mxu0
          %630 = vmatprep.mubr.bf16.mxu0 0
          %631 = vmatmul.mubr.bf16.gmra.mxu0 %v506
          %v632 = vpop.f32.mrf.mxu0
          %v633 = vadd.f32 %v468, %v632
          %v634 = vpop.f32.mrf.mxu0
          %v635 = vpop.f32.mrf.mxu0
          %v636 = vadd.f32 %v468, %v635
          %v637 = vpop.f32.mrf.mxu0
          %638 = vmatprep.mubr.bf16.mxu0 0
          %639 = vmatmul.mubr.bf16.gmra.mxu0 %v507
          %v640 = vpop.f32.mrf.mxu0
          %v641 = vadd.f32 %v468, %v640
          %v642 = vpop.f32.mrf.mxu0
          %v643 = vpop.f32.mrf.mxu0
          %v644 = vadd.f32 %v468, %v643
          %v645 = vpop.f32.mrf.mxu0
          %646 = vmatprep.mubr.bf16.mxu0 0
          %647 = vmatmul.mubr.bf16.gmra.mxu0 %v508
          %v648 = vpop.f32.mrf.mxu0
          %v649 = vadd.f32 %v468, %v648
          %v650 = vpop.f32.mrf.mxu0
          %v651 = vpop.f32.mrf.mxu0
          %v652 = vadd.f32 %v468, %v651
          %v653 = vpop.f32.mrf.mxu0
          %654 = vmatprep.mubr.bf16.mxu0 0
          %655 = vmatmul.mubr.bf16.gmra.mxu0 %v509
          %v656 = vpop.f32.mrf.mxu0
          %v657 = vadd.f32 %v468, %v656
          %v658 = vpop.f32.mrf.mxu0
          %v659 = vpop.f32.mrf.mxu0
          %v660 = vadd.f32 %v468, %v659
          %v661 = vpop.f32.mrf.mxu0
          %662 = vdwg.mxu0
          %v663 = vmul.f32 %v601, %v601
          %v664 = vmul.f32 %v604, %v604
          %v665 = vmul.f32 %v609, %v609
          %v666 = vmul.f32 %v612, %v612
          %v667 = vmul.f32 %v617, %v617
          %v668 = vmul.f32 %v620, %v620
          %v669 = vmul.f32 %v625, %v625
          %v670 = vmul.f32 %v628, %v628
          %v671 = vmul.f32 %v633, %v633
          %v672 = vmul.f32 %v636, %v636
          %v673 = vmul.f32 %v641, %v641
          %v674 = vmul.f32 %v644, %v644
          %v675 = vmul.f32 %v649, %v649
          %v676 = vmul.f32 %v652, %v652
          %v677 = vmul.f32 %v657, %v657
          %v678 = vmul.f32 %v660, %v660
          %v679 = vmul.f32 %v601, %v663
          %v680 = vmul.f32 %v604, %v664
          %v681 = vmul.f32 %v609, %v665
          %v682 = vmul.f32 %v612, %v666
          %v683 = vmul.f32 %v617, %v667
          %v684 = vmul.f32 %v620, %v668
          %v685 = vmul.f32 %v625, %v669
          %v686 = vmul.f32 %v628, %v670
          %v687 = vmul.f32 %v633, %v671
          %v688 = vmul.f32 %v636, %v672
          %v689 = vmul.f32 %v641, %v673
          %v690 = vmul.f32 %v644, %v674
          %v691 = vmul.f32 %v649, %v675
          %v692 = vmul.f32 %v652, %v676
          %v693 = vmul.f32 %v657, %v677
          %v694 = vmul.f32 %v660, %v678
          %v695 = vmul.f32 %v679, 0.044715
          %v696 = vmul.f32 %v680, 0.044715
          %v697 = vmul.f32 %v681, 0.044715
          %v698 = vmul.f32 %v682, 0.044715
          %v699 = vmul.f32 %v683, 0.044715
          %v700 = vmul.f32 %v684, 0.044715
          %v701 = vmul.f32 %v685, 0.044715
          %v702 = vmul.f32 %v686, 0.044715
          %v703 = vmul.f32 %v687, 0.044715
          %v704 = vmul.f32 %v688, 0.044715
          %v705 = vmul.f32 %v689, 0.044715
          %v706 = vmul.f32 %v690, 0.044715
          %v707 = vmul.f32 %v691, 0.044715
          %v708 = vmul.f32 %v692, 0.044715
          %v709 = vmul.f32 %v693, 0.044715
          %v710 = vmul.f32 %v694, 0.044715
          %v711 = vadd.f32 %v601, %v695
          %v712 = vadd.f32 %v604, %v696
          %v713 = vadd.f32 %v609, %v697
          %v714 = vadd.f32 %v612, %v698
          %v715 = vadd.f32 %v617, %v699
          %v716 = vadd.f32 %v620, %v700
          %v717 = vadd.f32 %v625, %v701
          %v718 = vadd.f32 %v628, %v702
          %v719 = vadd.f32 %v633, %v703
          %v720 = vadd.f32 %v636, %v704
          %v721 = vadd.f32 %v641, %v705
          %v722 = vadd.f32 %v644, %v706
          %v723 = vadd.f32 %v649, %v707
          %v724 = vadd.f32 %v652, %v708
          %v725 = vadd.f32 %v657, %v709
          %v726 = vadd.f32 %v660, %v710
          %v727 = vmul.f32 %v711, 0.7978846
          %v728 = vmul.f32 %v712, 0.7978846
          %v729 = vmul.f32 %v713, 0.7978846
          %v730 = vmul.f32 %v714, 0.7978846
          %v731 = vmul.f32 %v715, 0.7978846
          %v732 = vmul.f32 %v716, 0.7978846
          %v733 = vmul.f32 %v717, 0.7978846
          %v734 = vmul.f32 %v718, 0.7978846
          %v735 = vmul.f32 %v719, 0.7978846
          %v736 = vmul.f32 %v720, 0.7978846
          %v737 = vmul.f32 %v721, 0.7978846
          %v738 = vmul.f32 %v722, 0.7978846
          %v739 = vmul.f32 %v723, 0.7978846
          %v740 = vmul.f32 %v724, 0.7978846
          %v741 = vmul.f32 %v725, 0.7978846
          %v742 = vmul.f32 %v726, 0.7978846
          %v743 = vtanh.pop %v727
          %v744 = vtanh.pop %v728
          %v745 = vtanh.pop %v729
          %v746 = vtanh.pop %v730
          %v747 = vtanh.pop %v731
          %v748 = vtanh.pop %v732
          %v749 = vtanh.pop %v733
          %v750 = vtanh.pop %v734
          %v751 = vtanh.pop %v735
          %v752 = vtanh.pop %v736
          %v753 = vtanh.pop %v737
          %v754 = vtanh.pop %v738
          %v755 = vtanh.pop %v739
          %v756 = vtanh.pop %v740
          %v757 = vtanh.pop %v741
          %v758 = vtanh.pop %v742
          %v759 = vadd.f32 %v743, 1.0
          %v760 = vadd.f32 %v744, 1.0
          %v761 = vadd.f32 %v745, 1.0
          %v762 = vadd.f32 %v746, 1.0
          %v763 = vadd.f32 %v747, 1.0
          %v764 = vadd.f32 %v748, 1.0
          %v765 = vadd.f32 %v749, 1.0
          %v766 = vadd.f32 %v750, 1.0
          %v767 = vadd.f32 %v751, 1.0
          %v768 = vadd.f32 %v752, 1.0
          %v769 = vadd.f32 %v753, 1.0
          %v770 = vadd.f32 %v754, 1.0
          %v771 = vadd.f32 %v755, 1.0
          %v772 = vadd.f32 %v756, 1.0
          %v773 = vadd.f32 %v757, 1.0
          %v774 = vadd.f32 %v758, 1.0
          %v775 = vmul.f32 %v759, 0.5
          %v776 = vmul.f32 %v760, 0.5
          %v777 = vmul.f32 %v761, 0.5
          %v778 = vmul.f32 %v762, 0.5
          %v779 = vmul.f32 %v763, 0.5
          %v780 = vmul.f32 %v764, 0.5
          %v781 = vmul.f32 %v765, 0.5
          %v782 = vmul.f32 %v766, 0.5
          %v783 = vmul.f32 %v767, 0.5
          %v784 = vmul.f32 %v768, 0.5
          %v785 = vmul.f32 %v769, 0.5
          %v786 = vmul.f32 %v770, 0.5
          %v787 = vmul.f32 %v771, 0.5
          %v788 = vmul.f32 %v772, 0.5
          %v789 = vmul.f32 %v773, 0.5
          %v790 = vmul.f32 %v774, 0.5
          %v791 = vmul.f32 %v601, %v775
          %v792 = vmul.f32 %v604, %v776
          %v793 = vmul.f32 %v609, %v777
          %v794 = vmul.f32 %v612, %v778
          %v795 = vmul.f32 %v617, %v779
          %v796 = vmul.f32 %v620, %v780
          %v797 = vmul.f32 %v625, %v781
          %v798 = vmul.f32 %v628, %v782
          %v799 = vmul.f32 %v633, %v783
          %v800 = vmul.f32 %v636, %v784
          %v801 = vmul.f32 %v641, %v785
          %v802 = vmul.f32 %v644, %v786
          %v803 = vmul.f32 %v649, %v787
          %v804 = vmul.f32 %v652, %v788
          %v805 = vmul.f32 %v657, %v789
          %v806 = vmul.f32 %v660, %v790
          %v807 = vmul.f32 %v791, %v791
          %v808 = vmul.f32 %v792, %v792
          %v809 = vmul.f32 %v793, %v793
          %v810 = vmul.f32 %v794, %v794
          %v811 = vmul.f32 %v795, %v795
          %v812 = vmul.f32 %v796, %v796
          %v813 = vmul.f32 %v797, %v797
          %v814 = vmul.f32 %v798, %v798
          %v815 = vmul.f32 %v799, %v799
          %v816 = vmul.f32 %v800, %v800
          %v817 = vmul.f32 %v801, %v801
          %v818 = vmul.f32 %v802, %v802
          %v819 = vmul.f32 %v803, %v803
          %v820 = vmul.f32 %v804, %v804
          %v821 = vmul.f32 %v805, %v805
          %v822 = vmul.f32 %v806, %v806
          %823 = vadd.xlane.f32.xlu0 %v807
          %v824 = vpop.xlane.xlu0 %823
          %825 = vadd.xlane.f32.xlu0 %v808
          %v826 = vpop.xlane.xlu0 %825
          %827 = vadd.xlane.f32.xlu0 %v809
          %v828 = vpop.xlane.xlu0 %827
          %829 = vadd.xlane.f32.xlu0 %v810
          %v830 = vpop.xlane.xlu0 %829
          %831 = vadd.xlane.f32.xlu0 %v811
          %v832 = vpop.xlane.xlu0 %831
          %833 = vadd.xlane.f32.xlu0 %v812
          %v834 = vpop.xlane.xlu0 %833
          %835 = vadd.xlane.f32.xlu0 %v813
          %v836 = vpop.xlane.xlu0 %835
          %837 = vadd.xlane.f32.xlu0 %v814
          %v838 = vpop.xlane.xlu0 %837
          %839 = vadd.xlane.f32.xlu0 %v815
          %v840 = vpop.xlane.xlu0 %839
          %841 = vadd.xlane.f32.xlu0 %v816
          %v842 = vpop.xlane.xlu0 %841
          %843 = vadd.xlane.f32.xlu0 %v817
          %v844 = vpop.xlane.xlu0 %843
          %845 = vadd.xlane.f32.xlu0 %v818
          %v846 = vpop.xlane.xlu0 %845
          %847 = vadd.xlane.f32.xlu0 %v819
          %v848 = vpop.xlane.xlu0 %847
          %849 = vadd.xlane.f32.xlu0 %v820
          %v850 = vpop.xlane.xlu0 %849
          %851 = vadd.xlane.f32.xlu0 %v821
          %v852 = vpop.xlane.xlu0 %851
          %853 = vadd.xlane.f32.xlu0 %v822
          %v854 = vpop.xlane.xlu0 %853
          %vm855 = vcmask 7168
          %856 = vst.msk [vmem:[#allocation6] sm:$0xff] %vm855, %v824
          %857 = vst.msk [vmem:[#allocation6 + $0x8] sm:$0xff] %vm855, %v826
          %858 = vst.msk [vmem:[#allocation6 + $0x10] sm:$0xff] %vm855, %v828
          %859 = vst.msk [vmem:[#allocation6 + $0x18] sm:$0xff] %vm855, %v830
          %860 = vst.msk [vmem:[#allocation6 + $0x20] sm:$0xff] %vm855, %v832
          %861 = vst.msk [vmem:[#allocation6 + $0x28] sm:$0xff] %vm855, %v834
          %862 = vst.msk [vmem:[#allocation6 + $0x30] sm:$0xff] %vm855, %v836
          %863 = vst.msk [vmem:[#allocation6 + $0x38] sm:$0xff] %vm855, %v838
          %864 = vst.msk [vmem:[#allocation6 + $0x40] sm:$0xff] %vm855, %v840
          %865 = vst.msk [vmem:[#allocation6 + $0x48] sm:$0xff] %vm855, %v842
          %866 = vst.msk [vmem:[#allocation6 + $0x50] sm:$0xff] %vm855, %v844
          %867 = vst.msk [vmem:[#allocation6 + $0x58] sm:$0xff] %vm855, %v846
          %868 = vst.msk [vmem:[#allocation6 + $0x60] sm:$0xff] %vm855, %v848
          %869 = vst.msk [vmem:[#allocation6 + $0x68] sm:$0xff] %vm855, %v850
          %870 = vst.msk [vmem:[#allocation6 + $0x70] sm:$0xff] %vm855, %v852
          %871 = vst.msk [vmem:[#allocation6 + $0x78] sm:$0xff] %vm855, %v854
          %v872 = vpack.c.bf16 %v792, %v791
          %v873 = vpack.c.bf16 %v794, %v793
          %v874 = vpack.c.bf16 %v796, %v795
          %v875 = vpack.c.bf16 %v798, %v797
          %v876 = vpack.c.bf16 %v800, %v799
          %v877 = vpack.c.bf16 %v802, %v801
          %v878 = vpack.c.bf16 %v804, %v803
          %v879 = vpack.c.bf16 %v806, %v805
          %v888 = vunpack.c.l.b16 %v872
          %v889 = vunpack.c.h.b16 %v872
          %v890 = vunpack.c.l.b16 %v873
          %v891 = vunpack.c.h.b16 %v873
          %v892 = vunpack.c.l.b16 %v874
          %v893 = vunpack.c.h.b16 %v874
          %v894 = vunpack.c.l.b16 %v875
          %v895 = vunpack.c.h.b16 %v875
          %v896 = vunpack.c.l.b16 %v876
          %v897 = vunpack.c.h.b16 %v876
          %v898 = vunpack.c.l.b16 %v877
          %v899 = vunpack.c.h.b16 %v877
          %v900 = vunpack.c.l.b16 %v878
          %v901 = vunpack.c.h.b16 %v878
          %v902 = vunpack.c.l.b16 %v879
          %v903 = vunpack.c.h.b16 %v879
          %v904 = vpack.c.b16 %v888, %v888
          %v905 = vpack.c.b16 %v889, %v889
          %v906 = vpack.c.b16 %v890, %v890
          %v907 = vpack.c.b16 %v891, %v891
          %v908 = vpack.c.b16 %v892, %v892
          %v909 = vpack.c.b16 %v893, %v893
          %v910 = vpack.c.b16 %v894, %v894
          %v911 = vpack.c.b16 %v895, %v895
          %v912 = vpack.c.b16 %v896, %v896
          %v913 = vpack.c.b16 %v897, %v897
          %v914 = vpack.c.b16 %v898, %v898
          %v915 = vpack.c.b16 %v899, %v899
          %v916 = vpack.c.b16 %v900, %v900
          %v917 = vpack.c.b16 %v901, %v901
          %v918 = vpack.c.b16 %v902, %v902
          %v919 = vpack.c.b16 %v903, %v903
          %936 = vst [vmem:[#allocation2] sm:$0xf] %v904
          %937 = vst [vmem:[#allocation2 + $0x4] sm:$0xf] %v905
          %938 = vst [vmem:[#allocation2 + $0x8] sm:$0xf] %v906
          %939 = vst [vmem:[#allocation2 + $0xc] sm:$0xf] %v907
          %940 = vst [vmem:[#allocation2 + $0x10] sm:$0xf] %v908
          %941 = vst [vmem:[#allocation2 + $0x14] sm:$0xf] %v909
          %942 = vst [vmem:[#allocation2 + $0x18] sm:$0xf] %v910
          %943 = vst [vmem:[#allocation2 + $0x1c] sm:$0xf] %v911
          %944 = vst [vmem:[#allocation2 + $0x20] sm:$0xf] %v912
          %945 = vst [vmem:[#allocation2 + $0x24] sm:$0xf] %v913
          %946 = vst [vmem:[#allocation2 + $0x28] sm:$0xf] %v914
          %947 = vst [vmem:[#allocation2 + $0x2c] sm:$0xf] %v915
          %948 = vst [vmem:[#allocation2 + $0x30] sm:$0xf] %v916
          %949 = vst [vmem:[#allocation2 + $0x34] sm:$0xf] %v917
          %950 = vst [vmem:[#allocation2 + $0x38] sm:$0xf] %v918
          %951 = vst [vmem:[#allocation2 + $0x3c] sm:$0xf] %v919
          %952 = vst.msk [vmem:[#allocation3] sm:$0xff] %vm855, -inf
          %953 = vst.msk [vmem:[#allocation3 + $0x8] sm:$0xff] %vm855, -inf
          %954 = vst.msk [vmem:[#allocation3 + $0x10] sm:$0xff] %vm855, -inf
          %955 = vst.msk [vmem:[#allocation3 + $0x18] sm:$0xff] %vm855, -inf
          %956 = vst.msk [vmem:[#allocation3 + $0x20] sm:$0xff] %vm855, -inf
          %957 = vst.msk [vmem:[#allocation3 + $0x28] sm:$0xff] %vm855, -inf
          %958 = vst.msk [vmem:[#allocation3 + $0x30] sm:$0xff] %vm855, -inf
          %959 = vst.msk [vmem:[#allocation3 + $0x38] sm:$0xff] %vm855, -inf
          %960 = vst.msk [vmem:[#allocation3 + $0x40] sm:$0xff] %vm855, -inf
          %961 = vst.msk [vmem:[#allocation3 + $0x48] sm:$0xff] %vm855, -inf
          %962 = vst.msk [vmem:[#allocation3 + $0x50] sm:$0xff] %vm855, -inf
          %963 = vst.msk [vmem:[#allocation3 + $0x58] sm:$0xff] %vm855, -inf
          %964 = vst.msk [vmem:[#allocation3 + $0x60] sm:$0xff] %vm855, -inf
          %965 = vst.msk [vmem:[#allocation3 + $0x68] sm:$0xff] %vm855, -inf
          %966 = vst.msk [vmem:[#allocation3 + $0x70] sm:$0xff] %vm855, -inf
          %967 = vst.msk [vmem:[#allocation3 + $0x78] sm:$0xff] %vm855, -inf
          %968 = vst.msk [vmem:[#allocation4] sm:$0xff] %vm855, 0.0
          %969 = vst.msk [vmem:[#allocation4 + $0x8] sm:$0xff] %vm855, 0.0
          %970 = vst.msk [vmem:[#allocation4 + $0x10] sm:$0xff] %vm855, 0.0
          %971 = vst.msk [vmem:[#allocation4 + $0x18] sm:$0xff] %vm855, 0.0
          %972 = vst.msk [vmem:[#allocation4 + $0x20] sm:$0xff] %vm855, 0.0
          %973 = vst.msk [vmem:[#allocation4 + $0x28] sm:$0xff] %vm855, 0.0
          %974 = vst.msk [vmem:[#allocation4 + $0x30] sm:$0xff] %vm855, 0.0
          %975 = vst.msk [vmem:[#allocation4 + $0x38] sm:$0xff] %vm855, 0.0
          %976 = vst.msk [vmem:[#allocation4 + $0x40] sm:$0xff] %vm855, 0.0
          %977 = vst.msk [vmem:[#allocation4 + $0x48] sm:$0xff] %vm855, 0.0
          %978 = vst.msk [vmem:[#allocation4 + $0x50] sm:$0xff] %vm855, 0.0
          %979 = vst.msk [vmem:[#allocation4 + $0x58] sm:$0xff] %vm855, 0.0
          %980 = vst.msk [vmem:[#allocation4 + $0x60] sm:$0xff] %vm855, 0.0
          %981 = vst.msk [vmem:[#allocation4 + $0x68] sm:$0xff] %vm855, 0.0
          %982 = vst.msk [vmem:[#allocation4 + $0x70] sm:$0xff] %vm855, 0.0
          %983 = vst.msk [vmem:[#allocation4 + $0x78] sm:$0xff] %vm855, 0.0
          %984 = vst.msk [vmem:[#allocation5] sm:$0xff] %vm855, 0.0
          %985 = vst.msk [vmem:[#allocation5 + $0x8] sm:$0xff] %vm855, 0.0
          %986 = vst.msk [vmem:[#allocation5 + $0x10] sm:$0xff] %vm855, 0.0
          %987 = vst.msk [vmem:[#allocation5 + $0x18] sm:$0xff] %vm855, 0.0
          %988 = vst.msk [vmem:[#allocation5 + $0x20] sm:$0xff] %vm855, 0.0
          %989 = vst.msk [vmem:[#allocation5 + $0x28] sm:$0xff] %vm855, 0.0
          %990 = vst.msk [vmem:[#allocation5 + $0x30] sm:$0xff] %vm855, 0.0
          %991 = vst.msk [vmem:[#allocation5 + $0x38] sm:$0xff] %vm855, 0.0
          %992 = vst.msk [vmem:[#allocation5 + $0x40] sm:$0xff] %vm855, 0.0
          %993 = vst.msk [vmem:[#allocation5 + $0x48] sm:$0xff] %vm855, 0.0
          %994 = vst.msk [vmem:[#allocation5 + $0x50] sm:$0xff] %vm855, 0.0
          %995 = vst.msk [vmem:[#allocation5 + $0x58] sm:$0xff] %vm855, 0.0
          %996 = vst.msk [vmem:[#allocation5 + $0x60] sm:$0xff] %vm855, 0.0
          %997 = vst.msk [vmem:[#allocation5 + $0x68] sm:$0xff] %vm855, 0.0
          %998 = vst.msk [vmem:[#allocation5 + $0x70] sm:$0xff] %vm855, 0.0
          %999 = vst.msk [vmem:[#allocation5 + $0x78] sm:$0xff] %vm855, 0.0
        $region85: #{mesh_transformer_trainer_forward.1} parent=76 // pred_fallthru
          _
        %v1000 = vld [vmem:[#allocation2] sm:$0xf]
        %v1001 = vld [vmem:[#allocation2 + $0x4] sm:$0xf]
        %v1002 = vld [vmem:[#allocation2 + $0x8] sm:$0xf]
        %v1003 = vld [vmem:[#allocation2 + $0xc] sm:$0xf]
        %v1004 = vld [vmem:[#allocation2 + $0x10] sm:$0xf]
        %v1005 = vld [vmem:[#allocation2 + $0x14] sm:$0xf]
        %v1006 = vld [vmem:[#allocation2 + $0x18] sm:$0xf]
        %v1007 = vld [vmem:[#allocation2 + $0x1c] sm:$0xf]
        %v1008 = vld [vmem:[#allocation2 + $0x20] sm:$0xf]
        %v1009 = vld [vmem:[#allocation2 + $0x24] sm:$0xf]
        %v1010 = vld [vmem:[#allocation2 + $0x28] sm:$0xf]
        %v1011 = vld [vmem:[#allocation2 + $0x2c] sm:$0xf]
        %v1012 = vld [vmem:[#allocation2 + $0x30] sm:$0xf]
        %v1013 = vld [vmem:[#allocation2 + $0x34] sm:$0xf]
        %v1014 = vld [vmem:[#allocation2 + $0x38] sm:$0xf]
        %v1015 = vld [vmem:[#allocation2 + $0x3c] sm:$0xf]
        %v1016 = vld [vmem:[%s360] sm:$0xf]
        %v1017 = vld [vmem:[%s360 + $0x4] sm:$0xf]
        %v1018 = vld [vmem:[%s360 + $0x8] sm:$0xf]
        %v1019 = vld [vmem:[%s360 + $0xc] sm:$0xf]
        %v1020 = vld [vmem:[%s360 + $0x10] sm:$0xf]
        %v1021 = vld [vmem:[%s360 + $0x14] sm:$0xf]
        %v1022 = vld [vmem:[%s360 + $0x18] sm:$0xf]
        %v1023 = vld [vmem:[%s360 + $0x1c] sm:$0xf]
        %v1024 = vld [vmem:[%s360 + $0x20] sm:$0xf]
        %v1025 = vld [vmem:[%s360 + $0x24] sm:$0xf]
        %v1026 = vld [vmem:[%s360 + $0x28] sm:$0xf]
        %v1027 = vld [vmem:[%s360 + $0x2c] sm:$0xf]
        %v1028 = vld [vmem:[%s360 + $0x30] sm:$0xf]
        %v1029 = vld [vmem:[%s360 + $0x34] sm:$0xf]
        %v1030 = vld [vmem:[%s360 + $0x38] sm:$0xf]
        %v1031 = vld [vmem:[%s360 + $0x3c] sm:$0xf]
        %v1048 = vunpack.c.l.b16 %v1000
        %v1049 = vunpack.c.l.b16 %v1001
        %v1050 = vunpack.c.l.b16 %v1002
        %v1051 = vunpack.c.l.b16 %v1003
        %v1052 = vunpack.c.l.b16 %v1004
        %v1053 = vunpack.c.l.b16 %v1005
        %v1054 = vunpack.c.l.b16 %v1006
        %v1055 = vunpack.c.l.b16 %v1007
        %v1056 = vunpack.c.l.b16 %v1008
        %v1057 = vunpack.c.l.b16 %v1009
        %v1058 = vunpack.c.l.b16 %v1010
        %v1059 = vunpack.c.l.b16 %v1011
        %v1060 = vunpack.c.l.b16 %v1012
        %v1061 = vunpack.c.l.b16 %v1013
        %v1062 = vunpack.c.l.b16 %v1014
        %v1063 = vunpack.c.l.b16 %v1015
        %v1064 = vpack.c.b16 %v1049, %v1048
        %v1065 = vpack.c.b16 %v1051, %v1050
        %v1066 = vpack.c.b16 %v1053, %v1052
        %v1067 = vpack.c.b16 %v1055, %v1054
        %v1068 = vpack.c.b16 %v1057, %v1056
        %v1069 = vpack.c.b16 %v1059, %v1058
        %v1070 = vpack.c.b16 %v1061, %v1060
        %v1071 = vpack.c.b16 %v1063, %v1062
        %v1096 = vunpack.c.l.b16 %v1016
        %v1097 = vunpack.c.l.b16 %v1017
        %v1098 = vunpack.c.l.b16 %v1018
        %v1099 = vunpack.c.l.b16 %v1019
        %v1100 = vunpack.c.l.b16 %v1020
        %v1101 = vunpack.c.l.b16 %v1021
        %v1102 = vunpack.c.l.b16 %v1022
        %v1103 = vunpack.c.l.b16 %v1023
        %v1104 = vunpack.c.l.b16 %v1024
        %v1105 = vunpack.c.l.b16 %v1025
        %v1106 = vunpack.c.l.b16 %v1026
        %v1107 = vunpack.c.l.b16 %v1027
        %v1108 = vunpack.c.l.b16 %v1028
        %v1109 = vunpack.c.l.b16 %v1029
        %v1110 = vunpack.c.l.b16 %v1030
        %v1111 = vunpack.c.l.b16 %v1031
        %v1112 = vpack.c.b16 %v1097, %v1096
        %v1113 = vpack.c.b16 %v1099, %v1098
        %v1114 = vpack.c.b16 %v1101, %v1100
        %v1115 = vpack.c.b16 %v1103, %v1102
        %v1116 = vpack.c.b16 %v1105, %v1104
        %v1117 = vpack.c.b16 %v1107, %v1106
        %v1118 = vpack.c.b16 %v1109, %v1108
        %v1119 = vpack.c.b16 %v1111, %v1110
        %1128 = vmatprep.subr.bf16.mxu0 0
        %1129 = vmatpush1.bf16.msra.mxu0 %v1119
        %1130 = vmatprep.subr.bf16.mxu0 0
        %1131 = vmatpush1.bf16.msra.mxu0 %v1118
        %1132 = vmatprep.subr.bf16.mxu0 0
        %1133 = vmatpush1.bf16.msra.mxu0 %v1117
        %1134 = vmatprep.subr.bf16.mxu0 0
        %1135 = vmatpush1.bf16.msra.mxu0 %v1116
        %1136 = vmatprep.subr.bf16.mxu0 0
        %1137 = vmatpush1.bf16.msra.mxu0 %v1115
        %1138 = vmatprep.subr.bf16.mxu0 0
        %1139 = vmatpush1.bf16.msra.mxu0 %v1114
        %1140 = vmatprep.subr.bf16.mxu0 0
        %1141 = vmatpush1.bf16.msra.mxu0 %v1113
        %1142 = vmatprep.subr.bf16.mxu0 0
        %1143 = vmatpush1.bf16.msra.mxu0 %v1112
        %1144 = vmatprep.subr.bf16.mxu0 0
        %1145 = vmatpush2.bf16.msra.mxu0 0
        %1146 = vmatprep.subr.bf16.mxu0 0
        %1147 = vmatpush2.bf16.msra.mxu0 0
        %1148 = vmatprep.subr.bf16.mxu0 0
        %1149 = vmatpush2.bf16.msra.mxu0 0
        %1150 = vmatprep.subr.bf16.mxu0 0
        %1151 = vmatpush2.bf16.msra.mxu0 0
        %1152 = vmatprep.subr.bf16.mxu0 0
        %1153 = vmatpush2.bf16.msra.mxu0 0
        %1154 = vmatprep.subr.bf16.mxu0 0
        %1155 = vmatpush2.bf16.msra.mxu0 0
        %1156 = vmatprep.subr.bf16.mxu0 0
        %1157 = vmatpush2.bf16.msra.mxu0 0
        %1158 = vmatprep.subr.bf16.mxu0 0
        %1159 = vmatpush2.bf16.msra.mxu0 0
        %1160 = vmatprep.mubr.bf16.mxu0 0
        %1161 = vmatmul.mubr.bf16.gmra.mxu0 %v1064
        %v1162 = vpop.f32.mrf.mxu0
        %v1163 = vadd.f32 0.0, %v1162
        %v1164 = vpop.f32.mrf.mxu0
        %v1165 = vpop.f32.mrf.mxu0
        %v1166 = vadd.f32 0.0, %v1165
        %v1167 = vpop.f32.mrf.mxu0
        %1168 = vmatprep.mubr.bf16.mxu0 0
        %1169 = vmatmul.mubr.bf16.gmra.mxu0 %v1065
        %v1170 = vpop.f32.mrf.mxu0
        %v1171 = vadd.f32 0.0, %v1170
        %v1172 = vpop.f32.mrf.mxu0
        %v1173 = vpop.f32.mrf.mxu0
        %v1174 = vadd.f32 0.0, %v1173
        %v1175 = vpop.f32.mrf.mxu0
        %1176 = vmatprep.mubr.bf16.mxu0 0
        %1177 = vmatmul.mubr.bf16.gmra.mxu0 %v1066
        %v1178 = vpop.f32.mrf.mxu0
        %v1179 = vadd.f32 0.0, %v1178
        %v1180 = vpop.f32.mrf.mxu0
        %v1181 = vpop.f32.mrf.mxu0
        %v1182 = vadd.f32 0.0, %v1181
        %v1183 = vpop.f32.mrf.mxu0
        %1184 = vmatprep.mubr.bf16.mxu0 0
        %1185 = vmatmul.mubr.bf16.gmra.mxu0 %v1067
        %v1186 = vpop.f32.mrf.mxu0
        %v1187 = vadd.f32 0.0, %v1186
        %v1188 = vpop.f32.mrf.mxu0
        %v1189 = vpop.f32.mrf.mxu0
        %v1190 = vadd.f32 0.0, %v1189
        %v1191 = vpop.f32.mrf.mxu0
        %1192 = vmatprep.mubr.bf16.mxu0 0
        %1193 = vmatmul.mubr.bf16.gmra.mxu0 %v1068
        %v1194 = vpop.f32.mrf.mxu0
        %v1195 = vadd.f32 0.0, %v1194
        %v1196 = vpop.f32.mrf.mxu0
        %v1197 = vpop.f32.mrf.mxu0
        %v1198 = vadd.f32 0.0, %v1197
        %v1199 = vpop.f32.mrf.mxu0
        %1200 = vmatprep.mubr.bf16.mxu0 0
        %1201 = vmatmul.mubr.bf16.gmra.mxu0 %v1069
        %v1202 = vpop.f32.mrf.mxu0
        %v1203 = vadd.f32 0.0, %v1202
        %v1204 = vpop.f32.mrf.mxu0
        %v1205 = vpop.f32.mrf.mxu0
        %v1206 = vadd.f32 0.0, %v1205
        %v1207 = vpop.f32.mrf.mxu0
        %1208 = vmatprep.mubr.bf16.mxu0 0
        %1209 = vmatmul.mubr.bf16.gmra.mxu0 %v1070
        %v1210 = vpop.f32.mrf.mxu0
        %v1211 = vadd.f32 0.0, %v1210
        %v1212 = vpop.f32.mrf.mxu0
        %v1213 = vpop.f32.mrf.mxu0
        %v1214 = vadd.f32 0.0, %v1213
        %v1215 = vpop.f32.mrf.mxu0
        %1216 = vmatprep.mubr.bf16.mxu0 0
        %1217 = vmatmul.mubr.bf16.gmra.mxu0 %v1071
        %v1218 = vpop.f32.mrf.mxu0
        %v1219 = vadd.f32 0.0, %v1218
        %v1220 = vpop.f32.mrf.mxu0
        %v1221 = vpop.f32.mrf.mxu0
        %v1222 = vadd.f32 0.0, %v1221
        %v1223 = vpop.f32.mrf.mxu0
        %1224 = vdwg.mxu0
        %v1225 = vld [vmem:[%s412] sm:$0xff]
        %v1226 = vld [vmem:[%s412 + $0x8] sm:$0xff]
        %v1227 = vld [vmem:[%s412 + $0x10] sm:$0xff]
        %v1228 = vld [vmem:[%s412 + $0x18] sm:$0xff]
        %v1229 = vld [vmem:[%s412 + $0x20] sm:$0xff]
        %v1230 = vld [vmem:[%s412 + $0x28] sm:$0xff]
        %v1231 = vld [vmem:[%s412 + $0x30] sm:$0xff]
        %v1232 = vld [vmem:[%s412 + $0x38] sm:$0xff]
        %v1233 = vld [vmem:[%s412 + $0x40] sm:$0xff]
        %v1234 = vld [vmem:[%s412 + $0x48] sm:$0xff]
        %v1235 = vld [vmem:[%s412 + $0x50] sm:$0xff]
        %v1236 = vld [vmem:[%s412 + $0x58] sm:$0xff]
        %v1237 = vld [vmem:[%s412 + $0x60] sm:$0xff]
        %v1238 = vld [vmem:[%s412 + $0x68] sm:$0xff]
        %v1239 = vld [vmem:[%s412 + $0x70] sm:$0xff]
        %v1240 = vld [vmem:[%s412 + $0x78] sm:$0xff]
        %s1241 = smul.u32 %s23, 128
        %v1242 = vstv %s1241
        %v1243 = vsub.s32 %v1225, %v1242
        %v1244 = vsub.s32 %v1226, %v1242
        %v1245 = vsub.s32 %v1227, %v1242
        %v1246 = vsub.s32 %v1228, %v1242
        %v1247 = vsub.s32 %v1229, %v1242
        %v1248 = vsub.s32 %v1230, %v1242
        %v1249 = vsub.s32 %v1231, %v1242
        %v1250 = vsub.s32 %v1232, %v1242
        %v1251 = vsub.s32 %v1233, %v1242
        %v1252 = vsub.s32 %v1234, %v1242
        %v1253 = vsub.s32 %v1235, %v1242
        %v1254 = vsub.s32 %v1236, %v1242
        %v1255 = vsub.s32 %v1237, %v1242
        %v1256 = vsub.s32 %v1238, %v1242
        %v1257 = vsub.s32 %v1239, %v1242
        %v1258 = vsub.s32 %v1240, %v1242
        %v1259 = vlaneseq
        %v1260 = vand.u32 %v1259, 127
        %v1261 = vld [vmem:[#allocation5] sm:$0xff]
        %v1262 = vld [vmem:[#allocation5 + $0x8] sm:$0xff]
        %v1263 = vld [vmem:[#allocation5 + $0x10] sm:$0xff]
        %v1264 = vld [vmem:[#allocation5 + $0x18] sm:$0xff]
        %v1265 = vld [vmem:[#allocation5 + $0x20] sm:$0xff]
        %v1266 = vld [vmem:[#allocation5 + $0x28] sm:$0xff]
        %v1267 = vld [vmem:[#allocation5 + $0x30] sm:$0xff]
        %v1268 = vld [vmem:[#allocation5 + $0x38] sm:$0xff]
        %v1269 = vld [vmem:[#allocation5 + $0x40] sm:$0xff]
        %v1270 = vld [vmem:[#allocation5 + $0x48] sm:$0xff]
        %v1271 = vld [vmem:[#allocation5 + $0x50] sm:$0xff]
        %v1272 = vld [vmem:[#allocation5 + $0x58] sm:$0xff]
        %v1273 = vld [vmem:[#allocation5 + $0x60] sm:$0xff]
        %v1274 = vld [vmem:[#allocation5 + $0x68] sm:$0xff]
        %v1275 = vld [vmem:[#allocation5 + $0x70] sm:$0xff]
        %v1276 = vld [vmem:[#allocation5 + $0x78] sm:$0xff]
        %1277 = vset.pattern.permute.xlu0 0
        %1278 = vperm.xlu0 %1277, %v1243
        %v1279 = vpop.permute.xlu0 %1278
        %1280 = vset.pattern.permute.xlu0 0
        %1281 = vperm.xlu0 %1280, %v1244
        %v1282 = vpop.permute.xlu0 %1281
        %1283 = vset.pattern.permute.xlu0 0
        %1284 = vperm.xlu0 %1283, %v1245
        %v1285 = vpop.permute.xlu0 %1284
        %1286 = vset.pattern.permute.xlu0 0
        %1287 = vperm.xlu0 %1286, %v1246
        %v1288 = vpop.permute.xlu0 %1287
        %1289 = vset.pattern.permute.xlu0 0
        %1290 = vperm.xlu0 %1289, %v1247
        %v1291 = vpop.permute.xlu0 %1290
        %1292 = vset.pattern.permute.xlu0 0
        %1293 = vperm.xlu0 %1292, %v1248
        %v1294 = vpop.permute.xlu0 %1293
        %1295 = vset.pattern.permute.xlu0 0
        %1296 = vperm.xlu0 %1295, %v1249
        %v1297 = vpop.permute.xlu0 %1296
        %1298 = vset.pattern.permute.xlu0 0
        %1299 = vperm.xlu0 %1298, %v1250
        %v1300 = vpop.permute.xlu0 %1299
        %1301 = vset.pattern.permute.xlu0 0
        %1302 = vperm.xlu0 %1301, %v1251
        %v1303 = vpop.permute.xlu0 %1302
        %1304 = vset.pattern.permute.xlu0 0
        %1305 = vperm.xlu0 %1304, %v1252
        %v1306 = vpop.permute.xlu0 %1305
        %1307 = vset.pattern.permute.xlu0 0
        %1308 = vperm.xlu0 %1307, %v1253
        %v1309 = vpop.permute.xlu0 %1308
        %1310 = vset.pattern.permute.xlu0 0
        %1311 = vperm.xlu0 %1310, %v1254
        %v1312 = vpop.permute.xlu0 %1311
        %1313 = vset.pattern.permute.xlu0 0
        %1314 = vperm.xlu0 %1313, %v1255
        %v1315 = vpop.permute.xlu0 %1314
        %1316 = vset.pattern.permute.xlu0 0
        %1317 = vperm.xlu0 %1316, %v1256
        %v1318 = vpop.permute.xlu0 %1317
        %1319 = vset.pattern.permute.xlu0 0
        %1320 = vperm.xlu0 %1319, %v1257
        %v1321 = vpop.permute.xlu0 %1320
        %1322 = vset.pattern.permute.xlu0 0
        %1323 = vperm.xlu0 %1322, %v1258
        %v1324 = vpop.permute.xlu0 %1323
        %vm1325 = vcmp.eq.s32.totalorder %v1260, %v1279
        %vm1326 = vcmp.eq.s32.totalorder %v1260, %v1282
        %vm1327 = vcmp.eq.s32.totalorder %v1260, %v1285
        %vm1328 = vcmp.eq.s32.totalorder %v1260, %v1288
        %vm1329 = vcmp.eq.s32.totalorder %v1260, %v1291
        %vm1330 = vcmp.eq.s32.totalorder %v1260, %v1294
        %vm1331 = vcmp.eq.s32.totalorder %v1260, %v1297
        %vm1332 = vcmp.eq.s32.totalorder %v1260, %v1300
        %vm1333 = vcmp.eq.s32.totalorder %v1260, %v1303
        %vm1334 = vcmp.eq.s32.totalorder %v1260, %v1306
        %vm1335 = vcmp.eq.s32.totalorder %v1260, %v1309
        %vm1336 = vcmp.eq.s32.totalorder %v1260, %v1312
        %vm1337 = vcmp.eq.s32.totalorder %v1260, %v1315
        %vm1338 = vcmp.eq.s32.totalorder %v1260, %v1318
        %vm1339 = vcmp.eq.s32.totalorder %v1260, %v1321
        %vm1340 = vcmp.eq.s32.totalorder %v1260, %v1324
        %v1341 = vsel %vm1325, %v1163, 0.0
        %v1342 = vsel %vm1326, %v1166, 0.0
        %v1343 = vsel %vm1327, %v1171, 0.0
        %v1344 = vsel %vm1328, %v1174, 0.0
        %v1345 = vsel %vm1329, %v1179, 0.0
        %v1346 = vsel %vm1330, %v1182, 0.0
        %v1347 = vsel %vm1331, %v1187, 0.0
        %v1348 = vsel %vm1332, %v1190, 0.0
        %v1349 = vsel %vm1333, %v1195, 0.0
        %v1350 = vsel %vm1334, %v1198, 0.0
        %v1351 = vsel %vm1335, %v1203, 0.0
        %v1352 = vsel %vm1336, %v1206, 0.0
        %v1353 = vsel %vm1337, %v1211, 0.0
        %v1354 = vsel %vm1338, %v1214, 0.0
        %v1355 = vsel %vm1339, %v1219, 0.0
        %v1356 = vsel %vm1340, %v1222, 0.0
        %1357 = vadd.xlane.f32.xlu0 %v1341
        %v1358 = vpop.xlane.xlu0 %1357
        %1359 = vadd.xlane.f32.xlu0 %v1342
        %v1360 = vpop.xlane.xlu0 %1359
        %1361 = vadd.xlane.f32.xlu0 %v1343
        %v1362 = vpop.xlane.xlu0 %1361
        %1363 = vadd.xlane.f32.xlu0 %v1344
        %v1364 = vpop.xlane.xlu0 %1363
        %1365 = vadd.xlane.f32.xlu0 %v1345
        %v1366 = vpop.xlane.xlu0 %1365
        %1367 = vadd.xlane.f32.xlu0 %v1346
        %v1368 = vpop.xlane.xlu0 %1367
        %1369 = vadd.xlane.f32.xlu0 %v1347
        %v1370 = vpop.xlane.xlu0 %1369
        %1371 = vadd.xlane.f32.xlu0 %v1348
        %v1372 = vpop.xlane.xlu0 %1371
        %1373 = vadd.xlane.f32.xlu0 %v1349
        %v1374 = vpop.xlane.xlu0 %1373
        %1375 = vadd.xlane.f32.xlu0 %v1350
        %v1376 = vpop.xlane.xlu0 %1375
        %1377 = vadd.xlane.f32.xlu0 %v1351
        %v1378 = vpop.xlane.xlu0 %1377
        %1379 = vadd.xlane.f32.xlu0 %v1352
        %v1380 = vpop.xlane.xlu0 %1379
        %1381 = vadd.xlane.f32.xlu0 %v1353
        %v1382 = vpop.xlane.xlu0 %1381
        %1383 = vadd.xlane.f32.xlu0 %v1354
        %v1384 = vpop.xlane.xlu0 %1383
        %1385 = vadd.xlane.f32.xlu0 %v1355
        %v1386 = vpop.xlane.xlu0 %1385
        %1387 = vadd.xlane.f32.xlu0 %v1356
        %v1388 = vpop.xlane.xlu0 %1387
        %v1389 = vadd.f32 %v1261, %v1358
        %v1390 = vadd.f32 %v1262, %v1360
        %v1391 = vadd.f32 %v1263, %v1362
        %v1392 = vadd.f32 %v1264, %v1364
        %v1393 = vadd.f32 %v1265, %v1366
        %v1394 = vadd.f32 %v1266, %v1368
        %v1395 = vadd.f32 %v1267, %v1370
        %v1396 = vadd.f32 %v1268, %v1372
        %v1397 = vadd.f32 %v1269, %v1374
        %v1398 = vadd.f32 %v1270, %v1376
        %v1399 = vadd.f32 %v1271, %v1378
        %v1400 = vadd.f32 %v1272, %v1380
        %v1401 = vadd.f32 %v1273, %v1382
        %v1402 = vadd.f32 %v1274, %v1384
        %v1403 = vadd.f32 %v1275, %v1386
        %v1404 = vadd.f32 %v1276, %v1388
        %vm1405 = vcmask 7168
        %1406 = vst.msk [vmem:[#allocation5] sm:$0xff] %vm1405, %v1389
        %1407 = vst.msk [vmem:[#allocation5 + $0x8] sm:$0xff] %vm1405, %v1390
        %1408 = vst.msk [vmem:[#allocation5 + $0x10] sm:$0xff] %vm1405, %v1391
        %1409 = vst.msk [vmem:[#allocation5 + $0x18] sm:$0xff] %vm1405, %v1392
        %1410 = vst.msk [vmem:[#allocation5 + $0x20] sm:$0xff] %vm1405, %v1393
        %1411 = vst.msk [vmem:[#allocation5 + $0x28] sm:$0xff] %vm1405, %v1394
        %1412 = vst.msk [vmem:[#allocation5 + $0x30] sm:$0xff] %vm1405, %v1395
        %1413 = vst.msk [vmem:[#allocation5 + $0x38] sm:$0xff] %vm1405, %v1396
        %1414 = vst.msk [vmem:[#allocation5 + $0x40] sm:$0xff] %vm1405, %v1397
        %1415 = vst.msk [vmem:[#allocation5 + $0x48] sm:$0xff] %vm1405, %v1398
        %1416 = vst.msk [vmem:[#allocation5 + $0x50] sm:$0xff] %vm1405, %v1399
        %1417 = vst.msk [vmem:[#allocation5 + $0x58] sm:$0xff] %vm1405, %v1400
        %1418 = vst.msk [vmem:[#allocation5 + $0x60] sm:$0xff] %vm1405, %v1401
        %1419 = vst.msk [vmem:[#allocation5 + $0x68] sm:$0xff] %vm1405, %v1402
        %1420 = vst.msk [vmem:[#allocation5 + $0x70] sm:$0xff] %vm1405, %v1403
        %1421 = vst.msk [vmem:[#allocation5 + $0x78] sm:$0xff] %vm1405, %v1404
        %v1422 = vld [vmem:[#allocation3] sm:$0xff]
        %v1423 = vld [vmem:[#allocation3 + $0x8] sm:$0xff]
        %v1424 = vld [vmem:[#allocation3 + $0x10] sm:$0xff]
        %v1425 = vld [vmem:[#allocation3 + $0x18] sm:$0xff]
        %v1426 = vld [vmem:[#allocation3 + $0x20] sm:$0xff]
        %v1427 = vld [vmem:[#allocation3 + $0x28] sm:$0xff]
        %v1428 = vld [vmem:[#allocation3 + $0x30] sm:$0xff]
        %v1429 = vld [vmem:[#allocation3 + $0x38] sm:$0xff]
        %v1430 = vld [vmem:[#allocation3 + $0x40] sm:$0xff]
        %v1431 = vld [vmem:[#allocation3 + $0x48] sm:$0xff]
        %v1432 = vld [vmem:[#allocation3 + $0x50] sm:$0xff]
        %v1433 = vld [vmem:[#allocation3 + $0x58] sm:$0xff]
        %v1434 = vld [vmem:[#allocation3 + $0x60] sm:$0xff]
        %v1435 = vld [vmem:[#allocation3 + $0x68] sm:$0xff]
        %v1436 = vld [vmem:[#allocation3 + $0x70] sm:$0xff]
        %v1437 = vld [vmem:[#allocation3 + $0x78] sm:$0xff]
        %1438 = vmax.xlane.f32.xlu0 %v1163
        %v1439 = vpop.xlane.xlu0 %1438
        %1440 = vmax.xlane.f32.xlu0 %v1166
        %v1441 = vpop.xlane.xlu0 %1440
        %1442 = vmax.xlane.f32.xlu0 %v1171
        %v1443 = vpop.xlane.xlu0 %1442
        %1444 = vmax.xlane.f32.xlu0 %v1174
        %v1445 = vpop.xlane.xlu0 %1444
        %1446 = vmax.xlane.f32.xlu0 %v1179
        %v1447 = vpop.xlane.xlu0 %1446
        %1448 = vmax.xlane.f32.xlu0 %v1182
        %v1449 = vpop.xlane.xlu0 %1448
        %1450 = vmax.xlane.f32.xlu0 %v1187
        %v1451 = vpop.xlane.xlu0 %1450
        %1452 = vmax.xlane.f32.xlu0 %v1190
        %v1453 = vpop.xlane.xlu0 %1452
        %1454 = vmax.xlane.f32.xlu0 %v1195
        %v1455 = vpop.xlane.xlu0 %1454
        %1456 = vmax.xlane.f32.xlu0 %v1198
        %v1457 = vpop.xlane.xlu0 %1456
        %1458 = vmax.xlane.f32.xlu0 %v1203
        %v1459 = vpop.xlane.xlu0 %1458
        %1460 = vmax.xlane.f32.xlu0 %v1206
        %v1461 = vpop.xlane.xlu0 %1460
        %1462 = vmax.xlane.f32.xlu0 %v1211
        %v1463 = vpop.xlane.xlu0 %1462
        %1464 = vmax.xlane.f32.xlu0 %v1214
        %v1465 = vpop.xlane.xlu0 %1464
        %1466 = vmax.xlane.f32.xlu0 %v1219
        %v1467 = vpop.xlane.xlu0 %1466
        %1468 = vmax.xlane.f32.xlu0 %v1222
        %v1469 = vpop.xlane.xlu0 %1468
        %v1470 = vmax.f32 %v1422, %v1439
        %v1471 = vmax.f32 %v1423, %v1441
        %v1472 = vmax.f32 %v1424, %v1443
        %v1473 = vmax.f32 %v1425, %v1445
        %v1474 = vmax.f32 %v1426, %v1447
        %v1475 = vmax.f32 %v1427, %v1449
        %v1476 = vmax.f32 %v1428, %v1451
        %v1477 = vmax.f32 %v1429, %v1453
        %v1478 = vmax.f32 %v1430, %v1455
        %v1479 = vmax.f32 %v1431, %v1457
        %v1480 = vmax.f32 %v1432, %v1459
        %v1481 = vmax.f32 %v1433, %v1461
        %v1482 = vmax.f32 %v1434, %v1463
        %v1483 = vmax.f32 %v1435, %v1465
        %v1484 = vmax.f32 %v1436, %v1467
        %v1485 = vmax.f32 %v1437, %v1469
        %v1486 = vld [vmem:[#allocation4] sm:$0xff]
        %v1487 = vld [vmem:[#allocation4 + $0x8] sm:$0xff]
        %v1488 = vld [vmem:[#allocation4 + $0x10] sm:$0xff]
        %v1489 = vld [vmem:[#allocation4 + $0x18] sm:$0xff]
        %v1490 = vld [vmem:[#allocation4 + $0x20] sm:$0xff]
        %v1491 = vld [vmem:[#allocation4 + $0x28] sm:$0xff]
        %v1492 = vld [vmem:[#allocation4 + $0x30] sm:$0xff]
        %v1493 = vld [vmem:[#allocation4 + $0x38] sm:$0xff]
        %v1494 = vld [vmem:[#allocation4 + $0x40] sm:$0xff]
        %v1495 = vld [vmem:[#allocation4 + $0x48] sm:$0xff]
        %v1496 = vld [vmem:[#allocation4 + $0x50] sm:$0xff]
        %v1497 = vld [vmem:[#allocation4 + $0x58] sm:$0xff]
        %v1498 = vld [vmem:[#allocation4 + $0x60] sm:$0xff]
        %v1499 = vld [vmem:[#allocation4 + $0x68] sm:$0xff]
        %v1500 = vld [vmem:[#allocation4 + $0x70] sm:$0xff]
        %v1501 = vld [vmem:[#allocation4 + $0x78] sm:$0xff]
        %v1502 = vsub.f32 %v1422, %v1470
        %v1503 = vsub.f32 %v1423, %v1471
        %v1504 = vsub.f32 %v1424, %v1472
        %v1505 = vsub.f32 %v1425, %v1473
        %v1506 = vsub.f32 %v1426, %v1474
        %v1507 = vsub.f32 %v1427, %v1475
        %v1508 = vsub.f32 %v1428, %v1476
        %v1509 = vsub.f32 %v1429, %v1477
        %v1510 = vsub.f32 %v1430, %v1478
        %v1511 = vsub.f32 %v1431, %v1479
        %v1512 = vsub.f32 %v1432, %v1480
        %v1513 = vsub.f32 %v1433, %v1481
        %v1514 = vsub.f32 %v1434, %v1482
        %v1515 = vsub.f32 %v1435, %v1483
        %v1516 = vsub.f32 %v1436, %v1484
        %v1517 = vsub.f32 %v1437, %v1485
        %v1518 = vmul.f32 %v1502, 1.442695
        %v1519 = vpow.pop %v1518
        %v1520 = vmul.f32 %v1503, 1.442695
        %v1521 = vpow.pop %v1520
        %v1522 = vmul.f32 %v1504, 1.442695
        %v1523 = vpow.pop %v1522
        %v1524 = vmul.f32 %v1505, 1.442695
        %v1525 = vpow.pop %v1524
        %v1526 = vmul.f32 %v1506, 1.442695
        %v1527 = vpow.pop %v1526
        %v1528 = vmul.f32 %v1507, 1.442695
        %v1529 = vpow.pop %v1528
        %v1530 = vmul.f32 %v1508, 1.442695
        %v1531 = vpow.pop %v1530
        %v1532 = vmul.f32 %v1509, 1.442695
        %v1533 = vpow.pop %v1532
        %v1534 = vmul.f32 %v1510, 1.442695
        %v1535 = vpow.pop %v1534
        %v1536 = vmul.f32 %v1511, 1.442695
        %v1537 = vpow.pop %v1536
        %v1538 = vmul.f32 %v1512, 1.442695
        %v1539 = vpow.pop %v1538
        %v1540 = vmul.f32 %v1513, 1.442695
        %v1541 = vpow.pop %v1540
        %v1542 = vmul.f32 %v1514, 1.442695
        %v1543 = vpow.pop %v1542
        %v1544 = vmul.f32 %v1515, 1.442695
        %v1545 = vpow.pop %v1544
        %v1546 = vmul.f32 %v1516, 1.442695
        %v1547 = vpow.pop %v1546
        %v1548 = vmul.f32 %v1517, 1.442695
        %v1549 = vpow.pop %v1548
        %v1550 = vmul.f32 %v1486, %v1519
        %v1551 = vmul.f32 %v1487, %v1521
        %v1552 = vmul.f32 %v1488, %v1523
        %v1553 = vmul.f32 %v1489, %v1525
        %v1554 = vmul.f32 %v1490, %v1527
        %v1555 = vmul.f32 %v1491, %v1529
        %v1556 = vmul.f32 %v1492, %v1531
        %v1557 = vmul.f32 %v1493, %v1533
        %v1558 = vmul.f32 %v1494, %v1535
        %v1559 = vmul.f32 %v1495, %v1537
        %v1560 = vmul.f32 %v1496, %v1539
        %v1561 = vmul.f32 %v1497, %v1541
        %v1562 = vmul.f32 %v1498, %v1543
        %v1563 = vmul.f32 %v1499, %v1545
        %v1564 = vmul.f32 %v1500, %v1547
        %v1565 = vmul.f32 %v1501, %v1549
        %1567 = vset.pattern.permute.xlu0 0
        %1568 = vperm.xlu0 %1567, %v1470
        %v1569 = vpop.permute.xlu0 %1568
        %1572 = vset.pattern.permute.xlu0 0
        %1573 = vperm.xlu0 %1572, %v1471
        %v1574 = vpop.permute.xlu0 %1573
        %1577 = vset.pattern.permute.xlu0 0
        %1578 = vperm.xlu0 %1577, %v1472
        %v1579 = vpop.permute.xlu0 %1578
        %1582 = vset.pattern.permute.xlu0 0
        %1583 = vperm.xlu0 %1582, %v1473
        %v1584 = vpop.permute.xlu0 %1583
        %1587 = vset.pattern.permute.xlu0 0
        %1588 = vperm.xlu0 %1587, %v1474
        %v1589 = vpop.permute.xlu0 %1588
        %1592 = vset.pattern.permute.xlu0 0
        %1593 = vperm.xlu0 %1592, %v1475
        %v1594 = vpop.permute.xlu0 %1593
        %1597 = vset.pattern.permute.xlu0 0
        %1598 = vperm.xlu0 %1597, %v1476
        %v1599 = vpop.permute.xlu0 %1598
        %1602 = vset.pattern.permute.xlu0 0
        %1603 = vperm.xlu0 %1602, %v1477
        %v1604 = vpop.permute.xlu0 %1603
        %1607 = vset.pattern.permute.xlu0 0
        %1608 = vperm.xlu0 %1607, %v1478
        %v1609 = vpop.permute.xlu0 %1608
        %1612 = vset.pattern.permute.xlu0 0
        %1613 = vperm.xlu0 %1612, %v1479
        %v1614 = vpop.permute.xlu0 %1613
        %1617 = vset.pattern.permute.xlu0 0
        %1618 = vperm.xlu0 %1617, %v1480
        %v1619 = vpop.permute.xlu0 %1618
        %1622 = vset.pattern.permute.xlu0 0
        %1623 = vperm.xlu0 %1622, %v1481
        %v1624 = vpop.permute.xlu0 %1623
        %1627 = vset.pattern.permute.xlu0 0
        %1628 = vperm.xlu0 %1627, %v1482
        %v1629 = vpop.permute.xlu0 %1628
        %1632 = vset.pattern.permute.xlu0 0
        %1633 = vperm.xlu0 %1632, %v1483
        %v1634 = vpop.permute.xlu0 %1633
        %1637 = vset.pattern.permute.xlu0 0
        %1638 = vperm.xlu0 %1637, %v1484
        %v1639 = vpop.permute.xlu0 %1638
        %1642 = vset.pattern.permute.xlu0 0
        %1643 = vperm.xlu0 %1642, %v1485
        %v1644 = vpop.permute.xlu0 %1643
        %v1646 = vsub.f32 %v1163, %v1569
        %v1647 = vsub.f32 %v1166, %v1574
        %v1648 = vsub.f32 %v1171, %v1579
        %v1649 = vsub.f32 %v1174, %v1584
        %v1650 = vsub.f32 %v1179, %v1589
        %v1651 = vsub.f32 %v1182, %v1594
        %v1652 = vsub.f32 %v1187, %v1599
        %v1653 = vsub.f32 %v1190, %v1604
        %v1654 = vsub.f32 %v1195, %v1609
        %v1655 = vsub.f32 %v1198, %v1614
        %v1656 = vsub.f32 %v1203, %v1619
        %v1657 = vsub.f32 %v1206, %v1624
        %v1658 = vsub.f32 %v1211, %v1629
        %v1659 = vsub.f32 %v1214, %v1634
        %v1660 = vsub.f32 %v1219, %v1639
        %v1661 = vsub.f32 %v1222, %v1644
        %v1662 = vmul.f32 %v1646, 1.442695
        %v1663 = vpow.pop %v1662
        %v1664 = vmul.f32 %v1647, 1.442695
        %v1665 = vpow.pop %v1664
        %v1666 = vmul.f32 %v1648, 1.442695
        %v1667 = vpow.pop %v1666
        %v1668 = vmul.f32 %v1649, 1.442695
        %v1669 = vpow.pop %v1668
        %v1670 = vmul.f32 %v1650, 1.442695
        %v1671 = vpow.pop %v1670
        %v1672 = vmul.f32 %v1651, 1.442695
        %v1673 = vpow.pop %v1672
        %v1674 = vmul.f32 %v1652, 1.442695
        %v1675 = vpow.pop %v1674
        %v1676 = vmul.f32 %v1653, 1.442695
        %v1677 = vpow.pop %v1676
        %v1678 = vmul.f32 %v1654, 1.442695
        %v1679 = vpow.pop %v1678
        %v1680 = vmul.f32 %v1655, 1.442695
        %v1681 = vpow.pop %v1680
        %v1682 = vmul.f32 %v1656, 1.442695
        %v1683 = vpow.pop %v1682
        %v1684 = vmul.f32 %v1657, 1.442695
        %v1685 = vpow.pop %v1684
        %v1686 = vmul.f32 %v1658, 1.442695
        %v1687 = vpow.pop %v1686
        %v1688 = vmul.f32 %v1659, 1.442695
        %v1689 = vpow.pop %v1688
        %v1690 = vmul.f32 %v1660, 1.442695
        %v1691 = vpow.pop %v1690
        %v1692 = vmul.f32 %v1661, 1.442695
        %v1693 = vpow.pop %v1692
        %1694 = vadd.xlane.f32.xlu0 %v1663
        %v1695 = vpop.xlane.xlu0 %1694
        %1696 = vadd.xlane.f32.xlu0 %v1665
        %v1697 = vpop.xlane.xlu0 %1696
        %1698 = vadd.xlane.f32.xlu0 %v1667
        %v1699 = vpop.xlane.xlu0 %1698
        %1700 = vadd.xlane.f32.xlu0 %v1669
        %v1701 = vpop.xlane.xlu0 %1700
        %1702 = vadd.xlane.f32.xlu0 %v1671
        %v1703 = vpop.xlane.xlu0 %1702
        %1704 = vadd.xlane.f32.xlu0 %v1673
        %v1705 = vpop.xlane.xlu0 %1704
        %1706 = vadd.xlane.f32.xlu0 %v1675
        %v1707 = vpop.xlane.xlu0 %1706
        %1708 = vadd.xlane.f32.xlu0 %v1677
        %v1709 = vpop.xlane.xlu0 %1708
        %1710 = vadd.xlane.f32.xlu0 %v1679
        %v1711 = vpop.xlane.xlu0 %1710
        %1712 = vadd.xlane.f32.xlu0 %v1681
        %v1713 = vpop.xlane.xlu0 %1712
        %1714 = vadd.xlane.f32.xlu0 %v1683
        %v1715 = vpop.xlane.xlu0 %1714
        %1716 = vadd.xlane.f32.xlu0 %v1685
        %v1717 = vpop.xlane.xlu0 %1716
        %1718 = vadd.xlane.f32.xlu0 %v1687
        %v1719 = vpop.xlane.xlu0 %1718
        %1720 = vadd.xlane.f32.xlu0 %v1689
        %v1721 = vpop.xlane.xlu0 %1720
        %1722 = vadd.xlane.f32.xlu0 %v1691
        %v1723 = vpop.xlane.xlu0 %1722
        %1724 = vadd.xlane.f32.xlu0 %v1693
        %v1725 = vpop.xlane.xlu0 %1724
        %v1726 = vadd.f32 %v1550, %v1695
        %v1727 = vadd.f32 %v1551, %v1697
        %v1728 = vadd.f32 %v1552, %v1699
        %v1729 = vadd.f32 %v1553, %v1701
        %v1730 = vadd.f32 %v1554, %v1703
        %v1731 = vadd.f32 %v1555, %v1705
        %v1732 = vadd.f32 %v1556, %v1707
        %v1733 = vadd.f32 %v1557, %v1709
        %v1734 = vadd.f32 %v1558, %v1711
        %v1735 = vadd.f32 %v1559, %v1713
        %v1736 = vadd.f32 %v1560, %v1715
        %v1737 = vadd.f32 %v1561, %v1717
        %v1738 = vadd.f32 %v1562, %v1719
        %v1739 = vadd.f32 %v1563, %v1721
        %v1740 = vadd.f32 %v1564, %v1723
        %v1741 = vadd.f32 %v1565, %v1725
        %1742 = vst.msk [vmem:[#allocation4] sm:$0xff] %vm1405, %v1726
        %1743 = vst.msk [vmem:[#allocation4 + $0x8] sm:$0xff] %vm1405, %v1727
        %1744 = vst.msk [vmem:[#allocation4 + $0x10] sm:$0xff] %vm1405, %v1728
        %1745 = vst.msk [vmem:[#allocation4 + $0x18] sm:$0xff] %vm1405, %v1729
        %1746 = vst.msk [vmem:[#allocation4 + $0x20] sm:$0xff] %vm1405, %v1730
        %1747 = vst.msk [vmem:[#allocation4 + $0x28] sm:$0xff] %vm1405, %v1731
        %1748 = vst.msk [vmem:[#allocation4 + $0x30] sm:$0xff] %vm1405, %v1732
        %1749 = vst.msk [vmem:[#allocation4 + $0x38] sm:$0xff] %vm1405, %v1733
        %1750 = vst.msk [vmem:[#allocation4 + $0x40] sm:$0xff] %vm1405, %v1734
        %1751 = vst.msk [vmem:[#allocation4 + $0x48] sm:$0xff] %vm1405, %v1735
        %1752 = vst.msk [vmem:[#allocation4 + $0x50] sm:$0xff] %vm1405, %v1736
        %1753 = vst.msk [vmem:[#allocation4 + $0x58] sm:$0xff] %vm1405, %v1737
        %1754 = vst.msk [vmem:[#allocation4 + $0x60] sm:$0xff] %vm1405, %v1738
        %1755 = vst.msk [vmem:[#allocation4 + $0x68] sm:$0xff] %vm1405, %v1739
        %1756 = vst.msk [vmem:[#allocation4 + $0x70] sm:$0xff] %vm1405, %v1740
        %1757 = vst.msk [vmem:[#allocation4 + $0x78] sm:$0xff] %vm1405, %v1741
        %1758 = vst.msk [vmem:[#allocation3] sm:$0xff] %vm1405, %v1470
        %1759 = vst.msk [vmem:[#allocation3 + $0x8] sm:$0xff] %vm1405, %v1471
        %1760 = vst.msk [vmem:[#allocation3 + $0x10] sm:$0xff] %vm1405, %v1472
        %1761 = vst.msk [vmem:[#allocation3 + $0x18] sm:$0xff] %vm1405, %v1473
        %1762 = vst.msk [vmem:[#allocation3 + $0x20] sm:$0xff] %vm1405, %v1474
        %1763 = vst.msk [vmem:[#allocation3 + $0x28] sm:$0xff] %vm1405, %v1475
        %1764 = vst.msk [vmem:[#allocation3 + $0x30] sm:$0xff] %vm1405, %v1476
        %1765 = vst.msk [vmem:[#allocation3 + $0x38] sm:$0xff] %vm1405, %v1477
        %1766 = vst.msk [vmem:[#allocation3 + $0x40] sm:$0xff] %vm1405, %v1478
        %1767 = vst.msk [vmem:[#allocation3 + $0x48] sm:$0xff] %vm1405, %v1479
        %1768 = vst.msk [vmem:[#allocation3 + $0x50] sm:$0xff] %vm1405, %v1480
        %1769 = vst.msk [vmem:[#allocation3 + $0x58] sm:$0xff] %vm1405, %v1481
        %1770 = vst.msk [vmem:[#allocation3 + $0x60] sm:$0xff] %vm1405, %v1482
        %1771 = vst.msk [vmem:[#allocation3 + $0x68] sm:$0xff] %vm1405, %v1483
        %1772 = vst.msk [vmem:[#allocation3 + $0x70] sm:$0xff] %vm1405, %v1484
        %1773 = vst.msk [vmem:[#allocation3 + $0x78] sm:$0xff] %vm1405, %v1485
        %p1774 = scmp.eq.s32.totalorder %s23, 1
        // Predicated region
        $region86: #{mesh_transformer_trainer_forward.1} parent=76 // pred_check
          %p1775 = pneg %p1774
        $region87: #{mesh_transformer_trainer_forward.1} parent=76 // pred_check_branch
          %1777 = sbr.rel (%p1775) target = $region89
        $region88: #{mesh_transformer_trainer_forward.1} parent=76 // pred_region
          %v1778 = vld [vmem:[#allocation3] sm:$0xff]
          %v1779 = vld [vmem:[#allocation3 + $0x8] sm:$0xff]
          %v1780 = vld [vmem:[#allocation3 + $0x10] sm:$0xff]
          %v1781 = vld [vmem:[#allocation3 + $0x18] sm:$0xff]
          %v1782 = vld [vmem:[#allocation3 + $0x20] sm:$0xff]
          %v1783 = vld [vmem:[#allocation3 + $0x28] sm:$0xff]
          %v1784 = vld [vmem:[#allocation3 + $0x30] sm:$0xff]
          %v1785 = vld [vmem:[#allocation3 + $0x38] sm:$0xff]
          %v1786 = vld [vmem:[#allocation3 + $0x40] sm:$0xff]
          %v1787 = vld [vmem:[#allocation3 + $0x48] sm:$0xff]
          %v1788 = vld [vmem:[#allocation3 + $0x50] sm:$0xff]
          %v1789 = vld [vmem:[#allocation3 + $0x58] sm:$0xff]
          %v1790 = vld [vmem:[#allocation3 + $0x60] sm:$0xff]
          %v1791 = vld [vmem:[#allocation3 + $0x68] sm:$0xff]
          %v1792 = vld [vmem:[#allocation3 + $0x70] sm:$0xff]
          %v1793 = vld [vmem:[#allocation3 + $0x78] sm:$0xff]
          %v1794 = vld [vmem:[#allocation4] sm:$0xff]
          %v1795 = vld [vmem:[#allocation4 + $0x8] sm:$0xff]
          %v1796 = vld [vmem:[#allocation4 + $0x10] sm:$0xff]
          %v1797 = vld [vmem:[#allocation4 + $0x18] sm:$0xff]
          %v1798 = vld [vmem:[#allocation4 + $0x20] sm:$0xff]
          %v1799 = vld [vmem:[#allocation4 + $0x28] sm:$0xff]
          %v1800 = vld [vmem:[#allocation4 + $0x30] sm:$0xff]
          %v1801 = vld [vmem:[#allocation4 + $0x38] sm:$0xff]
          %v1802 = vld [vmem:[#allocation4 + $0x40] sm:$0xff]
          %v1803 = vld [vmem:[#allocation4 + $0x48] sm:$0xff]
          %v1804 = vld [vmem:[#allocation4 + $0x50] sm:$0xff]
          %v1805 = vld [vmem:[#allocation4 + $0x58] sm:$0xff]
          %v1806 = vld [vmem:[#allocation4 + $0x60] sm:$0xff]
          %v1807 = vld [vmem:[#allocation4 + $0x68] sm:$0xff]
          %v1808 = vld [vmem:[#allocation4 + $0x70] sm:$0xff]
          %v1809 = vld [vmem:[#allocation4 + $0x78] sm:$0xff]
          %v1810 = vlog2.pop %v1794
          %v1811 = vmul.f32 %v1810, 0.6931472
          %v1812 = vlog2.pop %v1795
          %v1813 = vmul.f32 %v1812, 0.6931472
          %v1814 = vlog2.pop %v1796
          %v1815 = vmul.f32 %v1814, 0.6931472
          %v1816 = vlog2.pop %v1797
          %v1817 = vmul.f32 %v1816, 0.6931472
          %v1818 = vlog2.pop %v1798
          %v1819 = vmul.f32 %v1818, 0.6931472
          %v1820 = vlog2.pop %v1799
          %v1821 = vmul.f32 %v1820, 0.6931472
          %v1822 = vlog2.pop %v1800
          %v1823 = vmul.f32 %v1822, 0.6931472
          %v1824 = vlog2.pop %v1801
          %v1825 = vmul.f32 %v1824, 0.6931472
          %v1826 = vlog2.pop %v1802
          %v1827 = vmul.f32 %v1826, 0.6931472
          %v1828 = vlog2.pop %v1803
          %v1829 = vmul.f32 %v1828, 0.6931472
          %v1830 = vlog2.pop %v1804
          %v1831 = vmul.f32 %v1830, 0.6931472
          %v1832 = vlog2.pop %v1805
          %v1833 = vmul.f32 %v1832, 0.6931472
          %v1834 = vlog2.pop %v1806
          %v1835 = vmul.f32 %v1834, 0.6931472
          %v1836 = vlog2.pop %v1807
          %v1837 = vmul.f32 %v1836, 0.6931472
          %v1838 = vlog2.pop %v1808
          %v1839 = vmul.f32 %v1838, 0.6931472
          %v1840 = vlog2.pop %v1809
          %v1841 = vmul.f32 %v1840, 0.6931472
          %v1842 = vadd.f32 %v1778, %v1811
          %v1843 = vadd.f32 %v1779, %v1813
          %v1844 = vadd.f32 %v1780, %v1815
          %v1845 = vadd.f32 %v1781, %v1817
          %v1846 = vadd.f32 %v1782, %v1819
          %v1847 = vadd.f32 %v1783, %v1821
          %v1848 = vadd.f32 %v1784, %v1823
          %v1849 = vadd.f32 %v1785, %v1825
          %v1850 = vadd.f32 %v1786, %v1827
          %v1851 = vadd.f32 %v1787, %v1829
          %v1852 = vadd.f32 %v1788, %v1831
          %v1853 = vadd.f32 %v1789, %v1833
          %v1854 = vadd.f32 %v1790, %v1835
          %v1855 = vadd.f32 %v1791, %v1837
          %v1856 = vadd.f32 %v1792, %v1839
          %v1857 = vadd.f32 %v1793, %v1841
          %v1858 = vld [vmem:[#allocation5] sm:$0xff]
          %v1859 = vld [vmem:[#allocation5 + $0x8] sm:$0xff]
          %v1860 = vld [vmem:[#allocation5 + $0x10] sm:$0xff]
          %v1861 = vld [vmem:[#allocation5 + $0x18] sm:$0xff]
          %v1862 = vld [vmem:[#allocation5 + $0x20] sm:$0xff]
          %v1863 = vld [vmem:[#allocation5 + $0x28] sm:$0xff]
          %v1864 = vld [vmem:[#allocation5 + $0x30] sm:$0xff]
          %v1865 = vld [vmem:[#allocation5 + $0x38] sm:$0xff]
          %v1866 = vld [vmem:[#allocation5 + $0x40] sm:$0xff]
          %v1867 = vld [vmem:[#allocation5 + $0x48] sm:$0xff]
          %v1868 = vld [vmem:[#allocation5 + $0x50] sm:$0xff]
          %v1869 = vld [vmem:[#allocation5 + $0x58] sm:$0xff]
          %v1870 = vld [vmem:[#allocation5 + $0x60] sm:$0xff]
          %v1871 = vld [vmem:[#allocation5 + $0x68] sm:$0xff]
          %v1872 = vld [vmem:[#allocation5 + $0x70] sm:$0xff]
          %v1873 = vld [vmem:[#allocation5 + $0x78] sm:$0xff]
          %v1874 = vsub.f32 %v1842, %v1858
          %v1875 = vsub.f32 %v1843, %v1859
          %v1876 = vsub.f32 %v1844, %v1860
          %v1877 = vsub.f32 %v1845, %v1861
          %v1878 = vsub.f32 %v1846, %v1862
          %v1879 = vsub.f32 %v1847, %v1863
          %v1880 = vsub.f32 %v1848, %v1864
          %v1881 = vsub.f32 %v1849, %v1865
          %v1882 = vsub.f32 %v1850, %v1866
          %v1883 = vsub.f32 %v1851, %v1867
          %v1884 = vsub.f32 %v1852, %v1868
          %v1885 = vsub.f32 %v1853, %v1869
          %v1886 = vsub.f32 %v1854, %v1870
          %v1887 = vsub.f32 %v1855, %v1871
          %v1888 = vsub.f32 %v1856, %v1872
          %v1889 = vsub.f32 %v1857, %v1873
          %1890 = vst.msk [vmem:[%s418] sm:$0xff] %vm1405, %v1874
          %1891 = vst.msk [vmem:[%s418 + $0x8] sm:$0xff] %vm1405, %v1875
          %1892 = vst.msk [vmem:[%s418 + $0x10] sm:$0xff] %vm1405, %v1876
          %1893 = vst.msk [vmem:[%s418 + $0x18] sm:$0xff] %vm1405, %v1877
          %1894 = vst.msk [vmem:[%s418 + $0x20] sm:$0xff] %vm1405, %v1878
          %1895 = vst.msk [vmem:[%s418 + $0x28] sm:$0xff] %vm1405, %v1879
          %1896 = vst.msk [vmem:[%s418 + $0x30] sm:$0xff] %vm1405, %v1880
          %1897 = vst.msk [vmem:[%s418 + $0x38] sm:$0xff] %vm1405, %v1881
          %1898 = vst.msk [vmem:[%s418 + $0x40] sm:$0xff] %vm1405, %v1882
          %1899 = vst.msk [vmem:[%s418 + $0x48] sm:$0xff] %vm1405, %v1883
          %1900 = vst.msk [vmem:[%s418 + $0x50] sm:$0xff] %vm1405, %v1884
          %1901 = vst.msk [vmem:[%s418 + $0x58] sm:$0xff] %vm1405, %v1885
          %1902 = vst.msk [vmem:[%s418 + $0x60] sm:$0xff] %vm1405, %v1886
          %1903 = vst.msk [vmem:[%s418 + $0x68] sm:$0xff] %vm1405, %v1887
          %1904 = vst.msk [vmem:[%s418 + $0x70] sm:$0xff] %vm1405, %v1888
          %1905 = vst.msk [vmem:[%s418 + $0x78] sm:$0xff] %vm1405, %v1889
          %v1906 = vld [vmem:[#allocation6] sm:$0xff]
          %v1907 = vld [vmem:[#allocation6 + $0x8] sm:$0xff]
          %v1908 = vld [vmem:[#allocation6 + $0x10] sm:$0xff]
          %v1909 = vld [vmem:[#allocation6 + $0x18] sm:$0xff]
          %v1910 = vld [vmem:[#allocation6 + $0x20] sm:$0xff]
          %v1911 = vld [vmem:[#allocation6 + $0x28] sm:$0xff]
          %v1912 = vld [vmem:[#allocation6 + $0x30] sm:$0xff]
          %v1913 = vld [vmem:[#allocation6 + $0x38] sm:$0xff]
          %v1914 = vld [vmem:[#allocation6 + $0x40] sm:$0xff]
          %v1915 = vld [vmem:[#allocation6 + $0x48] sm:$0xff]
          %v1916 = vld [vmem:[#allocation6 + $0x50] sm:$0xff]
          %v1917 = vld [vmem:[#allocation6 + $0x58] sm:$0xff]
          %v1918 = vld [vmem:[#allocation6 + $0x60] sm:$0xff]
          %v1919 = vld [vmem:[#allocation6 + $0x68] sm:$0xff]
          %v1920 = vld [vmem:[#allocation6 + $0x70] sm:$0xff]
          %v1921 = vld [vmem:[#allocation6 + $0x78] sm:$0xff]
          %1922 = vst.msk [vmem:[%s424] sm:$0xff] %vm1405, %v1906
          %1923 = vst.msk [vmem:[%s424 + $0x8] sm:$0xff] %vm1405, %v1907
          %1924 = vst.msk [vmem:[%s424 + $0x10] sm:$0xff] %vm1405, %v1908
          %1925 = vst.msk [vmem:[%s424 + $0x18] sm:$0xff] %vm1405, %v1909
          %1926 = vst.msk [vmem:[%s424 + $0x20] sm:$0xff] %vm1405, %v1910
          %1927 = vst.msk [vmem:[%s424 + $0x28] sm:$0xff] %vm1405, %v1911
          %1928 = vst.msk [vmem:[%s424 + $0x30] sm:$0xff] %vm1405, %v1912
          %1929 = vst.msk [vmem:[%s424 + $0x38] sm:$0xff] %vm1405, %v1913
          %1930 = vst.msk [vmem:[%s424 + $0x40] sm:$0xff] %vm1405, %v1914
          %1931 = vst.msk [vmem:[%s424 + $0x48] sm:$0xff] %vm1405, %v1915
          %1932 = vst.msk [vmem:[%s424 + $0x50] sm:$0xff] %vm1405, %v1916
          %1933 = vst.msk [vmem:[%s424 + $0x58] sm:$0xff] %vm1405, %v1917
          %1934 = vst.msk [vmem:[%s424 + $0x60] sm:$0xff] %vm1405, %v1918
          %1935 = vst.msk [vmem:[%s424 + $0x68] sm:$0xff] %vm1405, %v1919
          %1936 = vst.msk [vmem:[%s424 + $0x70] sm:$0xff] %vm1405, %v1920
          %1937 = vst.msk [vmem:[%s424 + $0x78] sm:$0xff] %vm1405, %v1921
        $region89: #{mesh_transformer_trainer_forward.1} parent=76 // pred_fallthru
          _
        %s1938 = smul.u32 16, %s22
        %p1939 = scmp.lt.s32.totalorder %s1938, 31
        %s1940 = scalar_select %p1939, %s1938, 31
        %s1941 = smul.addr %s1940, 8
        %s1942 = scalar_lea.vmem %s5, %s1941
        %s1943 = smul.u32 16, %s22
        %p1944 = scmp.lt.s32.totalorder %s1943, 31
        %s1945 = scalar_select %p1944, %s1943, 31
        %s1946 = smul.addr %s1945, 8
        %s1947 = scalar_lea.vmem %s6, %s1946
        // Predicated region
        $region90: #{mesh_transformer_trainer_forward.1} parent=76 // pred_check
          %p1948 = pneg %p168
        $region91: #{mesh_transformer_trainer_forward.1} parent=76 // pred_check_branch
          %1950 = sbr.rel (%p1948) target = $region93
        $region92: #{mesh_transformer_trainer_forward.1} parent=76 // pred_region
          %s1951 = smul.u32 16, %s22
        $region93: #{mesh_transformer_trainer_forward.1} parent=76 // pred_fallthru
          _
        // Predicated region
        $region94: #{mesh_transformer_trainer_forward.1} parent=76 // pred_check
          %p1952 = pneg %p194
        $region95: #{mesh_transformer_trainer_forward.1} parent=76 // pred_check_branch
          %1954 = sbr.rel (%p1952) target = $region97
        $region96: #{mesh_transformer_trainer_forward.1} parent=76 // pred_region
          %s1955 = smul.u32 16, %s22
        $region97: #{mesh_transformer_trainer_forward.1} parent=76 // pred_fallthru
          _
      $region77: #{mesh_transformer_trainer_forward.1} parent=5 // pred_fallthru
        _
      %p1956 = scmp.le.s32.totalorder 2, %s13
      // Predicated region
      $region98: #{mesh_transformer_trainer_forward.1} parent=5 // pred_check
        %p1957 = pneg %p1956
      $region99: #{mesh_transformer_trainer_forward.1} parent=5 // pred_check_branch
        %1959 = sbr.rel (%p1957) target = $region101
      $region100: #{mesh_transformer_trainer_forward.1} parent=5 // pred_region
        %s1960 = ssub.s32 %s13, 2
        // Predicated region
        $region102: #{mesh_transformer_trainer_forward.1} parent=100 // pred_check
          %p1961 = pneg %p174
        $region103: #{mesh_transformer_trainer_forward.1} parent=100 // pred_check_branch
          %1963 = sbr.rel (%p1961) target = $region105
        $region104: #{mesh_transformer_trainer_forward.1} parent=100 // pred_region
          %s1964 = smul.u32 16, %s24
          %p1965 = scmp.lt.s32.totalorder %s1964, 31
          %s1966 = scalar_select %p1965, %s1964, 31
          %s1967 = smul.addr %s1966, 8
          %s1968 = scalar_lea.vmem %s5, %s1967
        $region105: #{mesh_transformer_trainer_forward.1} parent=100 // pred_fallthru
          _
        // Predicated region
        $region106: #{mesh_transformer_trainer_forward.1} parent=100 // pred_check
          %p1969 = pneg %p200
        $region107: #{mesh_transformer_trainer_forward.1} parent=100 // pred_check_branch
          %1971 = sbr.rel (%p1969) target = $region109
        $region108: #{mesh_transformer_trainer_forward.1} parent=100 // pred_region
          %s1972 = smul.u32 16, %s24
          %p1973 = scmp.lt.s32.totalorder %s1972, 31
          %s1974 = scalar_select %p1973, %s1972, 31
          %s1975 = smul.addr %s1974, 8
          %s1976 = scalar_lea.vmem %s6, %s1975
        $region109: #{mesh_transformer_trainer_forward.1} parent=100 // pred_fallthru
          _
      $region101: #{mesh_transformer_trainer_forward.1} parent=5 // pred_fallthru
        _
    $region6: #{mesh_transformer_trainer_forward.1} parent=1 // loop_footer
      %s17 = sadd.s32 1, %s13
    $region7: #{mesh_transformer_trainer_forward.1} parent=1 // loop_footer_branch
      %12 = sbr.rel target = $region3
    $region8: #{mesh_transformer_trainer_forward.1} parent=1 // loop_exit
      _

</llo_original>
